<compile_context>
chip_gen: v7x
topology: tpu7x:2x2x1
jax: 0.10.0
libtpu: 0.0.40
codegen_flags: <defaults>
</compile_context>

<pallas_src>
import functools

import jax
import jax.numpy as jnp
from jax.experimental import pallas as pl
from jax.experimental.pallas import tpu as pltpu

EPS = 1e-6
GROUP_KERNEL = (3, 3, 1)  # Conv3d(1,1,(k_t,k_d,1),bias=False), all-ones (TVAE convention)


def _grouper_kernel(beta_ref, u_ref, z_ref, out_ref, *, k_t, k_d, eps):
    """One batch tile per grid step.

    beta_ref : SMEM (1,)                            correlated_mean_beta
    u_ref    : VMEM (TB, n_t, n_caps, cap_dim, hw)
    z_ref    : VMEM (TB, n_t, n_caps, cap_dim, hw)
    out_ref  : VMEM (TB, n_t, n_caps, cap_dim, hw)
    """
    u = u_ref[...].astype(jnp.float32)
    usq = u * u  # squaring commutes with the (value-copying) circular pad

    # All-ones Conv3d over the circularly padded (n_t, cap_dim) window is a
    # separable circular box filter: 1D pass over n_t, then over cap_dim.
    # Static-shift jnp.roll lowers to slices + concatenate (leading / sublane
    # axes only; the lane axis hw is never shifted, so loads stay aligned).
    p_t, p_d = k_t // 2, k_d // 2
    acc_t = usq
    for s in range(1, p_t + 1):
        acc_t = acc_t + jnp.roll(usq, s, axis=1) + jnp.roll(usq, -s, axis=1)
    v = acc_t
    for s in range(1, p_d + 1):
        v = v + jnp.roll(acc_t, s, axis=3) + jnp.roll(acc_t, -s, axis=3)

    std = jax.lax.rsqrt(v + eps)                 # single EUP rsqrt, no sqrt+divide
    beta = beta_ref[0]
    out_ref[...] = ((z_ref[...].astype(jnp.float32) + beta) * std).astype(out_ref.dtype)


def stationary_capsules_1d(z, u, beta, *, n_caps, cap_dim, n_transforms,
                           ksize=GROUP_KERNEL, eps=EPS):
    """z, u: (B, n_transforms*n_caps*cap_dim, h, w); beta: (1,)."""
    B, C, h, w = u.shape
    n_t = n_transforms
    hw = h * w
    assert C == n_t * n_caps * cap_dim
    k_t, k_d, k_s = ksize
    # TODO(synk): `model` / `padder` are generic nn.Modules in the spec; we hardcode the
    # TVAE convention (all-ones Conv3d(1,1,(k_t,k_d,1),bias=False) + circular padding).
    assert k_s == 1 and k_t % 2 == 1 and k_d % 2 == 1
    assert k_t // 2 < n_t and k_d // 2 < cap_dim

    # Row-major reshapes == torch .view(); no permutes / no padded HBM copy needed.
    u5 = u.reshape(B, n_t, n_caps, cap_dim, hw)
    z5 = z.reshape(B, n_t, n_caps, cap_dim, hw)

    # --- batch-tile sizing: MB-scale blocks, but safe for v7x's 64 MiB VMEM ---
    itemsize = jnp.dtype(z.dtype).itemsize
    per_b_bytes = n_t * n_caps * cap_dim * hw * itemsize
    max_block_bytes = 3 * 1024 * 1024                 # per-array block target
    tb = max(1, min(B, max_block_bytes // max(per_b_bytes, 1)))
    if B >= 2:
        tb = max(1, min(tb, B // 2))                  # keep >= 2 grid steps (v7x: 2 TCs)
    while B % tb:                                     # avoid partial (masked) blocks
        tb -= 1

    kernel = functools.partial(_grouper_kernel, k_t=k_t, k_d=k_d, eps=eps)
    blk = (tb, n_t, n_caps, cap_dim, hw)
    idx = lambda b: (b, 0, 0, 0, 0)

    out5 = pl.pallas_call(
        kernel,
        out_shape=jax.ShapeDtypeStruct((B, n_t, n_caps, cap_dim, hw), z.dtype),
        grid=(B // tb,),
        in_specs=[
            pl.BlockSpec(memory_space=pltpu.MemorySpace.SMEM),   # beta scalar
            pl.BlockSpec(blk, idx),                              # u
            pl.BlockSpec(blk, idx),                              # z
        ],
        out_specs=pl.BlockSpec(blk, idx),
        compiler_params=pltpu.CompilerParams(
            dimension_semantics=("parallel",),
            vmem_limit_bytes=48 * 1024 * 1024,
        ),
    )(beta, u5, z5)
    return out5.reshape(z.shape)


def _reference(z, u, beta, *, n_caps, cap_dim, n_transforms,
               ksize=GROUP_KERNEL, eps=EPS):
    """Pure-JAX reference literally mirroring the PyTorch forward (with permutes)."""
    B, C, h, w = u.shape
    n_t = n_transforms
    hw = h * w
    k_t, k_d, _ = ksize
    p_t, p_d = k_t // 2, k_d // 2

    u_caps = u.reshape(B, n_t, n_caps, cap_dim, hw)
    u_caps = jnp.transpose(u_caps, (0, 2, 1, 3, 4))          # (B, n_caps, n_t, cap_dim, hw)
    u_caps = u_caps.astype(jnp.float32) ** 2.0
    u_pad = jnp.pad(u_caps, ((0, 0), (0, 0), (p_t, p_t), (p_d, p_d), (0, 0)), mode="wrap")
    v = jnp.zeros_like(u_caps)
    for dt in range(k_t):
        for dd in range(k_d):
            v = v + u_pad[:, :, dt:dt + n_t, dd:dd + cap_dim, :]
    v = jnp.transpose(v, (0, 2, 1, 3, 4)).reshape(z.shape)   # back to z layout
    std = 1.0 / jnp.sqrt(v + eps)
    s = (z.astype(jnp.float32) + beta[0]) * std
    return s.astype(z.dtype)


if __name__ == "__main__":
    # Small shapes consistent with the module: C = n_transforms * n_caps * cap_dim.
    B, n_t, n_caps, cap_dim = 2, 4, 8, 16
    h = w = 16                                   # hw = 256 -> lane-dense last dim
    C = n_t * n_caps * cap_dim                   # 512

    key = jax.random.PRNGKey(0)
    kz, ku = jax.random.split(key)
    z = jax.random.normal(kz, (B, C, h, w), dtype=jnp.float32)
    u = jax.random.normal(ku, (B, C, h, w), dtype=jnp.float32)

    # correlated_mean_beta = ones(1) * mu_init (deterministic parameter init)
    mu_init = 1.0
    beta = jnp.ones((1,), dtype=jnp.float32) * mu_init

    out = stationary_capsules_1d(z, u, beta, n_caps=n_caps, cap_dim=cap_dim,
                                 n_transforms=n_t)
    out = jax.block_until_ready(out)

    ref = _reference(z, u, beta, n_caps=n_caps, cap_dim=cap_dim, n_transforms=n_t)
    assert out.shape == z.shape and out.dtype == z.dtype
    assert jnp.allclose(out, ref, rtol=1e-5, atol=1e-5), "mismatch vs pure-JAX reference"
    print("KERNEL_OK")
</pallas_src>

<mosaic_0001>
module attributes {stable_mosaic.version = 11 : i64} {
  func.func @_grouper_kernel(%arg0: i32, %arg1: memref<1xf32, #tpu.memory_space<smem>>, %arg2: memref<1x4x8x16x256xf32, #tpu.memory_space<vmem>>, %arg3: memref<1x4x8x16x256xf32, #tpu.memory_space<vmem>>, %arg4: memref<1x4x8x16x256xf32, #tpu.memory_space<vmem>>) attributes {dimension_semantics = [#tpu.dimension_semantics<parallel>], iteration_bounds = array<i64: 2>, scalar_prefetch = 0 : i64, scratch_operands = 0 : i64, tpu.core_type = #tpu.core_type<tc>, window_params = [{transform_indices = @transform_0, window_bounds = array<i64: 1>}, {transform_indices = @transform_1, window_bounds = array<i64: 1, 4, 8, 16, 256>}, {transform_indices = @transform_2, window_bounds = array<i64: 1, 4, 8, 16, 256>}, {transform_indices = @transform_3, window_bounds = array<i64: 1, 4, 8, 16, 256>}]} {
    %c0 = arith.constant 0 : index
    %c0_0 = arith.constant 0 : index
    %c0_1 = arith.constant 0 : index
    %c0_2 = arith.constant 0 : index
    %c0_3 = arith.constant 0 : index
    %0 = vector.load %arg2[%c0, %c0_0, %c0_1, %c0_2, %c0_3] : memref<1x4x8x16x256xf32, #tpu.memory_space<vmem>>, vector<1x4x8x16x256xf32>
    %1 = arith.mulf %0, %0 : vector<1x4x8x16x256xf32>
    %2 = vector.extract_strided_slice %1 {offsets = [0, 3, 0, 0, 0], sizes = [1, 1, 8, 16, 256], strides = [1, 1, 1, 1, 1]} : vector<1x4x8x16x256xf32> to vector<1x1x8x16x256xf32>
    %3 = vector.extract_strided_slice %1 {offsets = [0, 0, 0, 0, 0], sizes = [1, 3, 8, 16, 256], strides = [1, 1, 1, 1, 1]} : vector<1x4x8x16x256xf32> to vector<1x3x8x16x256xf32>
    %4 = tpu.concatenate %2, %3 in 1 : vector<1x1x8x16x256xf32>, vector<1x3x8x16x256xf32> -> vector<1x4x8x16x256xf32>
    %5 = arith.addf %1, %4 : vector<1x4x8x16x256xf32>
    %6 = vector.extract_strided_slice %1 {offsets = [0, 1, 0, 0, 0], sizes = [1, 3, 8, 16, 256], strides = [1, 1, 1, 1, 1]} : vector<1x4x8x16x256xf32> to vector<1x3x8x16x256xf32>
    %7 = vector.extract_strided_slice %1 {offsets = [0, 0, 0, 0, 0], sizes = [1, 1, 8, 16, 256], strides = [1, 1, 1, 1, 1]} : vector<1x4x8x16x256xf32> to vector<1x1x8x16x256xf32>
    %8 = tpu.concatenate %6, %7 in 1 : vector<1x3x8x16x256xf32>, vector<1x1x8x16x256xf32> -> vector<1x4x8x16x256xf32>
    %9 = arith.addf %5, %8 : vector<1x4x8x16x256xf32>
    %10 = vector.extract_strided_slice %9 {offsets = [0, 0, 0, 15, 0], sizes = [1, 4, 8, 1, 256], strides = [1, 1, 1, 1, 1]} : vector<1x4x8x16x256xf32> to vector<1x4x8x1x256xf32>
    %11 = vector.extract_strided_slice %9 {offsets = [0, 0, 0, 0, 0], sizes = [1, 4, 8, 15, 256], strides = [1, 1, 1, 1, 1]} : vector<1x4x8x16x256xf32> to vector<1x4x8x15x256xf32>
    %12 = tpu.concatenate %10, %11 in 3 : vector<1x4x8x1x256xf32>, vector<1x4x8x15x256xf32> -> vector<1x4x8x16x256xf32>
    %13 = arith.addf %9, %12 : vector<1x4x8x16x256xf32>
    %14 = vector.extract_strided_slice %9 {offsets = [0, 0, 0, 1, 0], sizes = [1, 4, 8, 15, 256], strides = [1, 1, 1, 1, 1]} : vector<1x4x8x16x256xf32> to vector<1x4x8x15x256xf32>
    %15 = vector.extract_strided_slice %9 {offsets = [0, 0, 0, 0, 0], sizes = [1, 4, 8, 1, 256], strides = [1, 1, 1, 1, 1]} : vector<1x4x8x16x256xf32> to vector<1x4x8x1x256xf32>
    %16 = tpu.concatenate %14, %15 in 3 : vector<1x4x8x15x256xf32>, vector<1x4x8x1x256xf32> -> vector<1x4x8x16x256xf32>
    %17 = arith.addf %13, %16 : vector<1x4x8x16x256xf32>
    %cst = arith.constant 9.99999997E-7 : f32
    %18 = vector.broadcast %cst : f32 to vector<1x4x8x16x256xf32>
    %19 = arith.addf %17, %18 : vector<1x4x8x16x256xf32>
    %20 = math.rsqrt %19 : vector<1x4x8x16x256xf32>
    %c0_4 = arith.constant 0 : index
    %21 = memref.load %arg1[%c0_4] : memref<1xf32, #tpu.memory_space<smem>>
    %c0_5 = arith.constant 0 : index
    %c0_6 = arith.constant 0 : index
    %c0_7 = arith.constant 0 : index
    %c0_8 = arith.constant 0 : index
    %c0_9 = arith.constant 0 : index
    %22 = vector.load %arg3[%c0_5, %c0_6, %c0_7, %c0_8, %c0_9] : memref<1x4x8x16x256xf32, #tpu.memory_space<vmem>>, vector<1x4x8x16x256xf32>
    %23 = vector.broadcast %21 : f32 to vector<1x4x8x16x256xf32>
    %24 = arith.addf %22, %23 : vector<1x4x8x16x256xf32>
    %25 = arith.mulf %24, %20 : vector<1x4x8x16x256xf32>
    %c0_10 = arith.constant 0 : index
    %c0_11 = arith.constant 0 : index
    %c0_12 = arith.constant 0 : index
    %c0_13 = arith.constant 0 : index
    %c0_14 = arith.constant 0 : index
    %26 = vector.load %arg4[%c0_10, %c0_11, %c0_12, %c0_13, %c0_14] : memref<1x4x8x16x256xf32, #tpu.memory_space<vmem>>, vector<1x4x8x16x256xf32>
    tpu.vector_store %arg4[%c0_10, %c0_11, %c0_12, %c0_13, %c0_14], %25 {strides = array<i32>} : memref<1x4x8x16x256xf32, #tpu.memory_space<vmem>>, vector<1x4x8x16x256xf32>,
    return
  }
  func.func @transform_0(%arg0: i32) -> i32 {
    %c0_i32 = arith.constant 0 : i32
    %c0_i32_0 = arith.constant 0 : i32
    return %c0_i32 : i32
  }
  func.func @transform_1(%arg0: i32) -> (i32, i32, i32, i32, i32) {
    %c0_i32 = arith.constant 0 : i32
    %c0_i32_0 = arith.constant 0 : i32
    %c0_i32_1 = arith.constant 0 : i32
    %c0_i32_2 = arith.constant 0 : i32
    %c0_i32_3 = arith.constant 0 : i32
    return %arg0, %c0_i32, %c0_i32_0, %c0_i32_1, %c0_i32_2 : i32, i32, i32, i32, i32
  }
  func.func @transform_2(%arg0: i32) -> (i32, i32, i32, i32, i32) {
    %c0_i32 = arith.constant 0 : i32
    %c0_i32_0 = arith.constant 0 : i32
    %c0_i32_1 = arith.constant 0 : i32
    %c0_i32_2 = arith.constant 0 : i32
    %c0_i32_3 = arith.constant 0 : i32
    return %arg0, %c0_i32, %c0_i32_0, %c0_i32_1, %c0_i32_2 : i32, i32, i32, i32, i32
  }
  func.func @transform_3(%arg0: i32) -> (i32, i32, i32, i32, i32) {
    %c0_i32 = arith.constant 0 : i32
    %c0_i32_0 = arith.constant 0 : i32
    %c0_i32_1 = arith.constant 0 : i32
    %c0_i32_2 = arith.constant 0 : i32
    %c0_i32_3 = arith.constant 0 : i32
    return %arg0, %c0_i32, %c0_i32_0, %c0_i32_1, %c0_i32_2 : i32, i32, i32, i32, i32
  }
}

</mosaic_0001>

<llo_original>
// kernel: tpu_custom_call.1
$region0: #{tpu_custom_call.1}
  #allocation0 [shape = 'u32[]', space=smem, size = 0x4, offset = 0x4, fixed_abs, tag = 'smem constant byte address 0x4 - core index']
  #allocation1 [shape = 'u32[144,128]{1,0:T(1,128)}', space=vmem, size = 0x12000, scoped, tag = 'internal scratch']
  #allocation2 [shape = 'f32[1]{0:T(128)S(6)}', space=smem, size = 0x200, scoped, tag = 'scoped memory for tpu_custom_call.1']
  %s0 = inlined_call_operand.<no memory space> [shape: f32[1], index: 0, kind: input, shape index: {}]
  %s1 = inlined_call_operand.hbm [shape: f32[2,4,8,16,256], index: 1, kind: input, shape index: {}]
  %s2 = inlined_call_operand.hbm [shape: f32[2,4,8,16,256], index: 2, kind: input, shape index: {}]
  %s3 = inlined_call_operand.hbm [shape: f32[2,4,8,16,256], index: 3, kind: output, shape index: {}]
  %s4 = sld [smem:[#allocation0]]
  $region53: #{tpu_custom_call.1} parent=0
    _
  %s6 = ssub.s32 1, %s4
  %s7 = scalar_select 0, %s6, %s4
  %8 = sst [smem:[#allocation2]] %s0
  $region1: #{tpu_custom_call.1} parent=0
    #allocation3 [shape = 'u8[1048576]{0}', space=vmem, size = 0x100000, scoped, tag = 'input window, operand 1']
    #allocation4 [shape = 's32[2]{0}', space=sflag, size = 0x8, scoped, tag = 'scoped memory for tpu_custom_call.1']
    #allocation5 [shape = 's32[2]{0}', space=sflag, size = 0x8, scoped, tag = 'scoped memory for tpu_custom_call.1']
    #allocation6 [shape = 'u8[1048576]{0}', space=vmem, size = 0x100000, scoped, tag = 'input window, operand 2']
    #allocation7 [shape = 's32[2]{0}', space=sflag, size = 0x8, scoped, tag = 'scoped memory for tpu_custom_call.1']
    #allocation8 [shape = 'u8[1048576]{0}', space=vmem, size = 0x100000, scoped, tag = 'output window, operand 0']
    %9 = vsyncpa [#allocation4], 0
    %s10 = scalar_lea.sflag [#allocation4], 1
    %11 = vsyncpa %s10, 0
    %12 = vsyncpa [#allocation7], 0
    %s13 = scalar_lea.sflag [#allocation7], 1
    %14 = vsyncpa %s13, 0
    %15 = vsyncpa [#allocation5], 0
    %s16 = scalar_lea.sflag [#allocation5], 1
    %17 = vsyncpa %s16, 0
    loop: start=0, step=1, limit=4
    $region2: #{tpu_custom_call.1} parent=1 // loop_pre_header
      _
    $region3: #{tpu_custom_call.1} parent=1 // loop_header
      %s19 = sphi 0, %s23
      %p20 = scmp.ge.s32.totalorder %s19, 4
      %s27 = sphi 0, %s27
      %s29 = sphi 0, %s27
      %s30 = sphi 0, %s29
      %s44 = sphi 0, %s30
      %s50 = sphi 0, %s52
      %s53 = sphi 0, %s50
      %s54 = sphi 0, %s53
      %s70 = sphi 0, %s54
      %s76 = sphi 0, %s78
      %s79 = sphi 0, %s76
      %s80 = sphi 0, %s79
      %s96 = sphi 0, %s80
      %s102 = sphi 0, %s104
      %s105 = sphi 0, %s102
      %s106 = sphi 0, %s105
      %s122 = sphi 0, %s106
    $region4: #{tpu_custom_call.1} parent=1 // loop_header_branch
      %22 = sbr.rel (%p20) target = $region8
    $region5: #{tpu_custom_call.1} parent=1 // loop_body
      %s24 = ssub.s32 %s19, 1
      %s25 = ssub.s32 %s19, 2
      %s26 = sadd.s32 %s19, 1
      %s28 = sadd.s32 %s27, 1
      %p31 = scmp.eq.s32.totalorder %s19, 1
      %p32 = scmp.ne.s32.totalorder %s27, %s29
      %p33 = scmp.eq.s32.totalorder %s19, 0
      %p34 = por %p32, %p33
      %p35 = scmp.ne.s32.totalorder %s27, %s29
      %p36 = scmp.eq.s32.totalorder %s24, 1
      %p37 = por %p35, %p36
      %p38 = scmp.ne.s32.totalorder %s29, %s30
      %p39 = scmp.eq.s32.totalorder %s24, 0
      %p40 = por %p38, %p39
      %p41 = scmp.ne.s32.totalorder %s29, %s30
      %p42 = scmp.eq.s32.totalorder %s25, 1
      %p43 = por %p41, %p42
      %p45 = scmp.ne.s32.totalorder %s30, %s44
      %p46 = scmp.eq.s32.totalorder %s25, 0
      %p47 = por %p45, %p46
      %s48 = ssub.s32 %s19, %s26
      %p49 = scmp.eq.s32.totalorder %s48, 0
      %s51 = sadd.s32 %s50, 1
      %s52 = scalar_select %p49, %s50, %s51
      %p55 = pneg %p49
      %p56 = scmp.eq.s32.totalorder %s19, 1
      %p57 = por %p55, %p56
      %p58 = scmp.ne.s32.totalorder %s50, %s53
      %p59 = scmp.eq.s32.totalorder %s19, 0
      %p60 = por %p58, %p59
      %p61 = scmp.ne.s32.totalorder %s50, %s53
      %p62 = scmp.eq.s32.totalorder %s24, 1
      %p63 = por %p61, %p62
      %p64 = scmp.ne.s32.totalorder %s53, %s54
      %p65 = scmp.eq.s32.totalorder %s24, 0
      %p66 = por %p64, %p65
      %p67 = scmp.ne.s32.totalorder %s53, %s54
      %p68 = scmp.eq.s32.totalorder %s25, 1
      %p69 = por %p67, %p68
      %p71 = scmp.ne.s32.totalorder %s54, %s70
      %p72 = scmp.eq.s32.totalorder %s25, 0
      %p73 = por %p71, %p72
      %s74 = ssub.s32 %s19, %s26
      %p75 = scmp.eq.s32.totalorder %s74, 0
      %s77 = sadd.s32 %s76, 1
      %s78 = scalar_select %p75, %s76, %s77
      %p81 = pneg %p75
      %p82 = scmp.eq.s32.totalorder %s19, 1
      %p83 = por %p81, %p82
      %p84 = scmp.ne.s32.totalorder %s76, %s79
      %p85 = scmp.eq.s32.totalorder %s19, 0
      %p86 = por %p84, %p85
      %p87 = scmp.ne.s32.totalorder %s76, %s79
      %p88 = scmp.eq.s32.totalorder %s24, 1
      %p89 = por %p87, %p88
      %p90 = scmp.ne.s32.totalorder %s79, %s80
      %p91 = scmp.eq.s32.totalorder %s24, 0
      %p92 = por %p90, %p91
      %p93 = scmp.ne.s32.totalorder %s79, %s80
      %p94 = scmp.eq.s32.totalorder %s25, 1
      %p95 = por %p93, %p94
      %p97 = scmp.ne.s32.totalorder %s80, %s96
      %p98 = scmp.eq.s32.totalorder %s25, 0
      %p99 = por %p97, %p98
      %s100 = ssub.s32 %s19, %s26
      %p101 = scmp.eq.s32.totalorder %s100, 0
      %s103 = sadd.s32 %s102, 1
      %s104 = scalar_select %p101, %s102, %s103
      %p107 = pneg %p101
      %p108 = scmp.eq.s32.totalorder %s19, 1
      %p109 = por %p107, %p108
      %p110 = scmp.ne.s32.totalorder %s102, %s105
      %p111 = scmp.eq.s32.totalorder %s19, 0
      %p112 = por %p110, %p111
      %p113 = scmp.ne.s32.totalorder %s102, %s105
      %p114 = scmp.eq.s32.totalorder %s24, 1
      %p115 = por %p113, %p114
      %p116 = scmp.ne.s32.totalorder %s105, %s106
      %p117 = scmp.eq.s32.totalorder %s24, 0
      %p118 = por %p116, %p117
      %p119 = scmp.ne.s32.totalorder %s105, %s106
      %p120 = scmp.eq.s32.totalorder %s25, 1
      %p121 = por %p119, %p120
      %p123 = scmp.ne.s32.totalorder %s106, %s122
      %p124 = scmp.eq.s32.totalorder %s25, 0
      %p125 = por %p123, %p124
      %p126 = scmp.le.s32.totalorder 1, %s19
      %p127 = scmp.lt.s32.totalorder %s19, 3
      %p128 = pnand %p126, %p127
      %p129 = pneg %p128
      // Predicated region
      $region9: #{tpu_custom_call.1} parent=5 // pred_check
        _
      $region10: #{tpu_custom_call.1} parent=5 // pred_check_branch
        %131 = sbr.rel (%p128) target = $region12
      $region11: #{tpu_custom_call.1} parent=5 // pred_region
        %s132 = ssub.s32 %s19, 1
        // Predicated region
        $region13: #{tpu_custom_call.1} parent=11 // pred_check
          %p133 = pneg %p40
        $region14: #{tpu_custom_call.1} parent=11 // pred_check_branch
          %135 = sbr.rel (%p133) target = $region16
        $region15: #{tpu_custom_call.1} parent=11 // pred_region
          _
        $region16: #{tpu_custom_call.1} parent=11 // pred_fallthru
          _
      $region12: #{tpu_custom_call.1} parent=5 // pred_fallthru
        _
      %p136 = scmp.lt.s32.totalorder %s19, 2
      // Predicated region
      $region17: #{tpu_custom_call.1} parent=5 // pred_check
        %p137 = pneg %p136
      $region18: #{tpu_custom_call.1} parent=5 // pred_check_branch
        %139 = sbr.rel (%p137) target = $region20
      $region19: #{tpu_custom_call.1} parent=5 // pred_region
        // Predicated region
        $region21: #{tpu_custom_call.1} parent=19 // pred_check
          %p140 = pneg %p60
        $region22: #{tpu_custom_call.1} parent=19 // pred_check_branch
          %142 = sbr.rel (%p140) target = $region24
        $region23: #{tpu_custom_call.1} parent=19 // pred_region
          %s143 = sand.u32 %s50, 1
          %s144 = scalar_lea.sflag [#allocation4], %s143
          %s145 = sand.u32 %s50, 1
          %s146 = smul.addr %s145, 1024
          %s147 = scalar_lea.vmem [#allocation3], %s146
          %s149 = ssub.s32 16384, 16384
          %150 = vsyncadd %s144, %s149
          %s151 = smul.addr %s19, 128
          %s152 = smul.addr %s151, 128
          %s153 = scalar_lea.hbm %s1, %s152
          %s154 = sshll.u32 %s147, 4
          %s155 = int_to_ptr.vmem [resolvable:$true] %s154
          %160 = dma.hbm_to_vmem [thread:$0]  %s153, 16384, %s155, %s144, 256, 256, 16
        $region24: #{tpu_custom_call.1} parent=19 // pred_fallthru
          _
        // Predicated region
        $region25: #{tpu_custom_call.1} parent=19 // pred_check
          %p161 = pneg %p86
        $region26: #{tpu_custom_call.1} parent=19 // pred_check_branch
          %163 = sbr.rel (%p161) target = $region28
        $region27: #{tpu_custom_call.1} parent=19 // pred_region
          %s164 = sand.u32 %s76, 1
          %s165 = scalar_lea.sflag [#allocation7], %s164
          %s166 = sand.u32 %s76, 1
          %s167 = smul.addr %s166, 1024
          %s168 = scalar_lea.vmem [#allocation6], %s167
          %s170 = ssub.s32 16384, 16384
          %171 = vsyncadd %s165, %s170
          %s172 = smul.addr %s19, 128
          %s173 = smul.addr %s172, 128
          %s174 = scalar_lea.hbm %s2, %s173
          %s175 = sshll.u32 %s168, 4
          %s176 = int_to_ptr.vmem [resolvable:$true] %s175
          %181 = dma.hbm_to_vmem [thread:$0]  %s174, 16384, %s176, %s165, 256, 256, 16
        $region28: #{tpu_custom_call.1} parent=19 // pred_fallthru
          _
      $region20: #{tpu_custom_call.1} parent=5 // pred_fallthru
        _
      %p182 = scmp.le.s32.totalorder 1, %s19
      %p183 = scmp.lt.s32.totalorder %s19, 3
      %p184 = pnand %p182, %p183
      %p185 = pneg %p184
      // Predicated region
      $region29: #{tpu_custom_call.1} parent=5 // pred_check
        _
      $region30: #{tpu_custom_call.1} parent=5 // pred_check_branch
        %187 = sbr.rel (%p184) target = $region32
      $region31: #{tpu_custom_call.1} parent=5 // pred_region
        %s188 = ssub.s32 %s19, 1
        %s189 = sand.u32 %s53, 1
        %s190 = scalar_lea.sflag [#allocation4], %s189
        %s191 = sand.u32 %s53, 1
        %s192 = smul.addr %s191, 1024
        %s193 = scalar_lea.vmem [#allocation3], %s192
        // Predicated region
        $region33: #{tpu_custom_call.1} parent=31 // pred_check
          %p194 = pneg %p66
        $region34: #{tpu_custom_call.1} parent=31 // pred_check_branch
          %196 = sbr.rel (%p194) target = $region36
        $region35: #{tpu_custom_call.1} parent=31 // pred_region
          %197 = dma.done %s190, 16384
        $region36: #{tpu_custom_call.1} parent=31 // pred_fallthru
          _
        %s198 = sand.u32 %s79, 1
        %s199 = scalar_lea.sflag [#allocation7], %s198
        %s200 = sand.u32 %s79, 1
        %s201 = smul.addr %s200, 1024
        %s202 = scalar_lea.vmem [#allocation6], %s201
        // Predicated region
        $region37: #{tpu_custom_call.1} parent=31 // pred_check
          %p203 = pneg %p92
        $region38: #{tpu_custom_call.1} parent=31 // pred_check_branch
          %205 = sbr.rel (%p203) target = $region40
        $region39: #{tpu_custom_call.1} parent=31 // pred_region
          %206 = dma.done %s199, 16384
        $region40: #{tpu_custom_call.1} parent=31 // pred_fallthru
          _
        %p207 = pneg %p40
        %p208 = pneg %p37
        %s209 = sand.u32 %s53, 1
        %s210 = scalar_lea.sflag [#allocation4], %s209
        %s211 = sand.u32 %s53, 1
        %s212 = smul.addr %s211, 1024
        %s213 = scalar_lea.vmem [#allocation3], %s212
        %p214 = pneg %p66
        %p215 = pneg %p63
        %s216 = sand.u32 %s79, 1
        %s217 = scalar_lea.sflag [#allocation7], %s216
        %s218 = sand.u32 %s79, 1
        %s219 = smul.addr %s218, 1024
        %s220 = scalar_lea.vmem [#allocation6], %s219
        %p221 = pneg %p92
        %p222 = pneg %p89
        %p223 = pneg %p118
        %p224 = pneg %p115
        %s225 = sand.u32 %s105, 1
        %s226 = scalar_lea.sflag [#allocation5], %s225
        %s227 = sand.u32 %s105, 1
        %s228 = smul.addr %s227, 1024
        %s229 = scalar_lea.vmem [#allocation8], %s228
        %v230 = vld [vmem:[%s193] sm:$0xff]
        %v231 = vld [vmem:[%s193 + $0x8] sm:$0xff]
        %v232 = vld [vmem:[%s193 + $0x10] sm:$0xff]
        %v233 = vld [vmem:[%s193 + $0x18] sm:$0xff]
        %v234 = vld [vmem:[%s193 + $0x20] sm:$0xff]
        %v235 = vld [vmem:[%s193 + $0x28] sm:$0xff]
        %v236 = vld [vmem:[%s193 + $0x30] sm:$0xff]
        %v237 = vld [vmem:[%s193 + $0x38] sm:$0xff]
        %v238 = vld [vmem:[%s193 + $0x40] sm:$0xff]
        %v239 = vld [vmem:[%s193 + $0x48] sm:$0xff]
        %v240 = vld [vmem:[%s193 + $0x50] sm:$0xff]
        %v241 = vld [vmem:[%s193 + $0x58] sm:$0xff]
        %v242 = vld [vmem:[%s193 + $0x60] sm:$0xff]
        %v243 = vld [vmem:[%s193 + $0x68] sm:$0xff]
        %v244 = vld [vmem:[%s193 + $0x70] sm:$0xff]
        %v245 = vld [vmem:[%s193 + $0x78] sm:$0xff]
        %v246 = vld [vmem:[%s193 + $0x80] sm:$0xff]
        %v247 = vld [vmem:[%s193 + $0x88] sm:$0xff]
        %v248 = vld [vmem:[%s193 + $0x90] sm:$0xff]
        %v249 = vld [vmem:[%s193 + $0x98] sm:$0xff]
        %v250 = vld [vmem:[%s193 + $0xa0] sm:$0xff]
        %v251 = vld [vmem:[%s193 + $0xa8] sm:$0xff]
        %v252 = vld [vmem:[%s193 + $0xb0] sm:$0xff]
        %v253 = vld [vmem:[%s193 + $0xb8] sm:$0xff]
        %v254 = vld [vmem:[%s193 + $0xc0] sm:$0xff]
        %v255 = vld [vmem:[%s193 + $0xc8] sm:$0xff]
        %v256 = vld [vmem:[%s193 + $0xd0] sm:$0xff]
        %v257 = vld [vmem:[%s193 + $0xd8] sm:$0xff]
        %v258 = vld [vmem:[%s193 + $0xe0] sm:$0xff]
        %v259 = vld [vmem:[%s193 + $0xe8] sm:$0xff]
        %v260 = vld [vmem:[%s193 + $0xf0] sm:$0xff]
        %v261 = vld [vmem:[%s193 + $0xf8] sm:$0xff]
        %v262 = vld [vmem:[%s193 + $0x100] sm:$0xff]
        %v263 = vld [vmem:[%s193 + $0x108] sm:$0xff]
        %v264 = vld [vmem:[%s193 + $0x110] sm:$0xff]
        %v265 = vld [vmem:[%s193 + $0x118] sm:$0xff]
        %v266 = vld [vmem:[%s193 + $0x120] sm:$0xff]
        %v267 = vld [vmem:[%s193 + $0x128] sm:$0xff]
        %v268 = vld [vmem:[%s193 + $0x130] sm:$0xff]
        %v269 = vld [vmem:[%s193 + $0x138] sm:$0xff]
        %v270 = vld [vmem:[%s193 + $0x140] sm:$0xff]
        %v271 = vld [vmem:[%s193 + $0x148] sm:$0xff]
        %v272 = vld [vmem:[%s193 + $0x150] sm:$0xff]
        %v273 = vld [vmem:[%s193 + $0x158] sm:$0xff]
        %v274 = vld [vmem:[%s193 + $0x160] sm:$0xff]
        %v275 = vld [vmem:[%s193 + $0x168] sm:$0xff]
        %v276 = vld [vmem:[%s193 + $0x170] sm:$0xff]
        %v277 = vld [vmem:[%s193 + $0x178] sm:$0xff]
        %v278 = vld [vmem:[%s193 + $0x180] sm:$0xff]
        %v279 = vld [vmem:[%s193 + $0x188] sm:$0xff]
        %v280 = vld [vmem:[%s193 + $0x190] sm:$0xff]
        %v281 = vld [vmem:[%s193 + $0x198] sm:$0xff]
        %v282 = vld [vmem:[%s193 + $0x1a0] sm:$0xff]
        %v283 = vld [vmem:[%s193 + $0x1a8] sm:$0xff]
        %v284 = vld [vmem:[%s193 + $0x1b0] sm:$0xff]
        %v285 = vld [vmem:[%s193 + $0x1b8] sm:$0xff]
        %v286 = vld [vmem:[%s193 + $0x1c0] sm:$0xff]
        %v287 = vld [vmem:[%s193 + $0x1c8] sm:$0xff]
        %v288 = vld [vmem:[%s193 + $0x1d0] sm:$0xff]
        %v289 = vld [vmem:[%s193 + $0x1d8] sm:$0xff]
        %v290 = vld [vmem:[%s193 + $0x1e0] sm:$0xff]
        %v291 = vld [vmem:[%s193 + $0x1e8] sm:$0xff]
        %v292 = vld [vmem:[%s193 + $0x1f0] sm:$0xff]
        %v293 = vld [vmem:[%s193 + $0x1f8] sm:$0xff]
        %v294 = vld [vmem:[%s193 + $0x200] sm:$0xff]
        %v295 = vld [vmem:[%s193 + $0x208] sm:$0xff]
        %v296 = vld [vmem:[%s193 + $0x210] sm:$0xff]
        %v297 = vld [vmem:[%s193 + $0x218] sm:$0xff]
        %v298 = vld [vmem:[%s193 + $0x220] sm:$0xff]
        %v299 = vld [vmem:[%s193 + $0x228] sm:$0xff]
        %v300 = vld [vmem:[%s193 + $0x230] sm:$0xff]
        %v301 = vld [vmem:[%s193 + $0x238] sm:$0xff]
        %v302 = vld [vmem:[%s193 + $0x240] sm:$0xff]
        %v303 = vld [vmem:[%s193 + $0x248] sm:$0xff]
        %v304 = vld [vmem:[%s193 + $0x250] sm:$0xff]
        %v305 = vld [vmem:[%s193 + $0x258] sm:$0xff]
        %v306 = vld [vmem:[%s193 + $0x260] sm:$0xff]
        %v307 = vld [vmem:[%s193 + $0x268] sm:$0xff]
        %v308 = vld [vmem:[%s193 + $0x270] sm:$0xff]
        %v309 = vld [vmem:[%s193 + $0x278] sm:$0xff]
        %v310 = vld [vmem:[%s193 + $0x280] sm:$0xff]
        %v311 = vld [vmem:[%s193 + $0x288] sm:$0xff]
        %v312 = vld [vmem:[%s193 + $0x290] sm:$0xff]
        %v313 = vld [vmem:[%s193 + $0x298] sm:$0xff]
        %v314 = vld [vmem:[%s193 + $0x2a0] sm:$0xff]
        %v315 = vld [vmem:[%s193 + $0x2a8] sm:$0xff]
        %v316 = vld [vmem:[%s193 + $0x2b0] sm:$0xff]
        %v317 = vld [vmem:[%s193 + $0x2b8] sm:$0xff]
        %v318 = vld [vmem:[%s193 + $0x2c0] sm:$0xff]
        %v319 = vld [vmem:[%s193 + $0x2c8] sm:$0xff]
        %v320 = vld [vmem:[%s193 + $0x2d0] sm:$0xff]
        %v321 = vld [vmem:[%s193 + $0x2d8] sm:$0xff]
        %v322 = vld [vmem:[%s193 + $0x2e0] sm:$0xff]
        %v323 = vld [vmem:[%s193 + $0x2e8] sm:$0xff]
        %v324 = vld [vmem:[%s193 + $0x2f0] sm:$0xff]
        %v325 = vld [vmem:[%s193 + $0x2f8] sm:$0xff]
        %v326 = vld [vmem:[%s193 + $0x300] sm:$0xff]
        %v327 = vld [vmem:[%s193 + $0x308] sm:$0xff]
        %v328 = vld [vmem:[%s193 + $0x310] sm:$0xff]
        %v329 = vld [vmem:[%s193 + $0x318] sm:$0xff]
        %v330 = vld [vmem:[%s193 + $0x320] sm:$0xff]
        %v331 = vld [vmem:[%s193 + $0x328] sm:$0xff]
        %v332 = vld [vmem:[%s193 + $0x330] sm:$0xff]
        %v333 = vld [vmem:[%s193 + $0x338] sm:$0xff]
        %v334 = vld [vmem:[%s193 + $0x340] sm:$0xff]
        %v335 = vld [vmem:[%s193 + $0x348] sm:$0xff]
        %v336 = vld [vmem:[%s193 + $0x350] sm:$0xff]
        %v337 = vld [vmem:[%s193 + $0x358] sm:$0xff]
        %v338 = vld [vmem:[%s193 + $0x360] sm:$0xff]
        %v339 = vld [vmem:[%s193 + $0x368] sm:$0xff]
        %v340 = vld [vmem:[%s193 + $0x370] sm:$0xff]
        %v341 = vld [vmem:[%s193 + $0x378] sm:$0xff]
        %v342 = vld [vmem:[%s193 + $0x380] sm:$0xff]
        %v343 = vld [vmem:[%s193 + $0x388] sm:$0xff]
        %v344 = vld [vmem:[%s193 + $0x390] sm:$0xff]
        %v345 = vld [vmem:[%s193 + $0x398] sm:$0xff]
        %v346 = vld [vmem:[%s193 + $0x3a0] sm:$0xff]
        %v347 = vld [vmem:[%s193 + $0x3a8] sm:$0xff]
        %v348 = vld [vmem:[%s193 + $0x3b0] sm:$0xff]
        %v349 = vld [vmem:[%s193 + $0x3b8] sm:$0xff]
        %v350 = vld [vmem:[%s193 + $0x3c0] sm:$0xff]
        %v351 = vld [vmem:[%s193 + $0x3c8] sm:$0xff]
        %v352 = vld [vmem:[%s193 + $0x3d0] sm:$0xff]
        %v353 = vld [vmem:[%s193 + $0x3d8] sm:$0xff]
        %v354 = vld [vmem:[%s193 + $0x3e0] sm:$0xff]
        %v355 = vld [vmem:[%s193 + $0x3e8] sm:$0xff]
        %v356 = vld [vmem:[%s193 + $0x3f0] sm:$0xff]
        %v357 = vld [vmem:[%s193 + $0x3f8] sm:$0xff]
        %v358 = vmul.f32 %v230, %v230
        %v359 = vmul.f32 %v231, %v231
        %v360 = vmul.f32 %v232, %v232
        %v361 = vmul.f32 %v233, %v233
        %v362 = vmul.f32 %v234, %v234
        %v363 = vmul.f32 %v235, %v235
        %v364 = vmul.f32 %v236, %v236
        %v365 = vmul.f32 %v237, %v237
        %v366 = vmul.f32 %v238, %v238
        %v367 = vmul.f32 %v239, %v239
        %v368 = vmul.f32 %v240, %v240
        %v369 = vmul.f32 %v241, %v241
        %v370 = vmul.f32 %v242, %v242
        %v371 = vmul.f32 %v243, %v243
        %v372 = vmul.f32 %v244, %v244
        %v373 = vmul.f32 %v245, %v245
        %v374 = vmul.f32 %v246, %v246
        %v375 = vmul.f32 %v247, %v247
        %v376 = vmul.f32 %v248, %v248
        %v377 = vmul.f32 %v249, %v249
        %v378 = vmul.f32 %v250, %v250
        %v379 = vmul.f32 %v251, %v251
        %v380 = vmul.f32 %v252, %v252
        %v381 = vmul.f32 %v253, %v253
        %v382 = vmul.f32 %v254, %v254
        %v383 = vmul.f32 %v255, %v255
        %v384 = vmul.f32 %v256, %v256
        %v385 = vmul.f32 %v257, %v257
        %v386 = vmul.f32 %v258, %v258
        %v387 = vmul.f32 %v259, %v259
        %v388 = vmul.f32 %v260, %v260
        %v389 = vmul.f32 %v261, %v261
        %v390 = vmul.f32 %v262, %v262
        %v391 = vmul.f32 %v263, %v263
        %v392 = vmul.f32 %v264, %v264
        %v393 = vmul.f32 %v265, %v265
        %v394 = vmul.f32 %v266, %v266
        %v395 = vmul.f32 %v267, %v267
        %v396 = vmul.f32 %v268, %v268
        %v397 = vmul.f32 %v269, %v269
        %v398 = vmul.f32 %v270, %v270
        %v399 = vmul.f32 %v271, %v271
        %v400 = vmul.f32 %v272, %v272
        %v401 = vmul.f32 %v273, %v273
        %v402 = vmul.f32 %v274, %v274
        %v403 = vmul.f32 %v275, %v275
        %v404 = vmul.f32 %v276, %v276
        %v405 = vmul.f32 %v277, %v277
        %v406 = vmul.f32 %v278, %v278
        %v407 = vmul.f32 %v279, %v279
        %v408 = vmul.f32 %v280, %v280
        %v409 = vmul.f32 %v281, %v281
        %v410 = vmul.f32 %v282, %v282
        %v411 = vmul.f32 %v283, %v283
        %v412 = vmul.f32 %v284, %v284
        %v413 = vmul.f32 %v285, %v285
        %v414 = vmul.f32 %v286, %v286
        %v415 = vmul.f32 %v287, %v287
        %v416 = vmul.f32 %v288, %v288
        %v417 = vmul.f32 %v289, %v289
        %v418 = vmul.f32 %v290, %v290
        %v419 = vmul.f32 %v291, %v291
        %v420 = vmul.f32 %v292, %v292
        %v421 = vmul.f32 %v293, %v293
        %v422 = vmul.f32 %v294, %v294
        %v423 = vmul.f32 %v295, %v295
        %v424 = vmul.f32 %v296, %v296
        %v425 = vmul.f32 %v297, %v297
        %v426 = vmul.f32 %v298, %v298
        %v427 = vmul.f32 %v299, %v299
        %v428 = vmul.f32 %v300, %v300
        %v429 = vmul.f32 %v301, %v301
        %v430 = vmul.f32 %v302, %v302
        %v431 = vmul.f32 %v303, %v303
        %v432 = vmul.f32 %v304, %v304
        %v433 = vmul.f32 %v305, %v305
        %v434 = vmul.f32 %v306, %v306
        %v435 = vmul.f32 %v307, %v307
        %v436 = vmul.f32 %v308, %v308
        %v437 = vmul.f32 %v309, %v309
        %v438 = vmul.f32 %v310, %v310
        %v439 = vmul.f32 %v311, %v311
        %v440 = vmul.f32 %v312, %v312
        %v441 = vmul.f32 %v313, %v313
        %v442 = vmul.f32 %v314, %v314
        %v443 = vmul.f32 %v315, %v315
        %v444 = vmul.f32 %v316, %v316
        %v445 = vmul.f32 %v317, %v317
        %v446 = vmul.f32 %v318, %v318
        %v447 = vmul.f32 %v319, %v319
        %v448 = vmul.f32 %v320, %v320
        %v449 = vmul.f32 %v321, %v321
        %v450 = vmul.f32 %v322, %v322
        %v451 = vmul.f32 %v323, %v323
        %v452 = vmul.f32 %v324, %v324
        %v453 = vmul.f32 %v325, %v325
        %v454 = vmul.f32 %v326, %v326
        %v455 = vmul.f32 %v327, %v327
        %v456 = vmul.f32 %v328, %v328
        %v457 = vmul.f32 %v329, %v329
        %v458 = vmul.f32 %v330, %v330
        %v459 = vmul.f32 %v331, %v331
        %v460 = vmul.f32 %v332, %v332
        %v461 = vmul.f32 %v333, %v333
        %v462 = vmul.f32 %v334, %v334
        %v463 = vmul.f32 %v335, %v335
        %v464 = vmul.f32 %v336, %v336
        %v465 = vmul.f32 %v337, %v337
        %v466 = vmul.f32 %v338, %v338
        %v467 = vmul.f32 %v339, %v339
        %v468 = vmul.f32 %v340, %v340
        %v469 = vmul.f32 %v341, %v341
        %v470 = vmul.f32 %v342, %v342
        %v471 = vmul.f32 %v343, %v343
        %v472 = vmul.f32 %v344, %v344
        %v473 = vmul.f32 %v345, %v345
        %v474 = vmul.f32 %v346, %v346
        %v475 = vmul.f32 %v347, %v347
        %v476 = vmul.f32 %v348, %v348
        %v477 = vmul.f32 %v349, %v349
        %v478 = vmul.f32 %v350, %v350
        %v479 = vmul.f32 %v351, %v351
        %v480 = vmul.f32 %v352, %v352
        %v481 = vmul.f32 %v353, %v353
        %v482 = vmul.f32 %v354, %v354
        %v483 = vmul.f32 %v355, %v355
        %v484 = vmul.f32 %v356, %v356
        %v485 = vmul.f32 %v357, %v357
        %v486 = vadd.f32 %v358, %v454
        %v487 = vadd.f32 %v359, %v455
        %v488 = vadd.f32 %v360, %v456
        %v489 = vadd.f32 %v361, %v457
        %v490 = vadd.f32 %v362, %v458
        %v491 = vadd.f32 %v363, %v459
        %v492 = vadd.f32 %v364, %v460
        %v493 = vadd.f32 %v365, %v461
        %v494 = vadd.f32 %v366, %v462
        %v495 = vadd.f32 %v367, %v463
        %v496 = vadd.f32 %v368, %v464
        %v497 = vadd.f32 %v369, %v465
        %v498 = vadd.f32 %v370, %v466
        %v499 = vadd.f32 %v371, %v467
        %v500 = vadd.f32 %v372, %v468
        %v501 = vadd.f32 %v373, %v469
        %v502 = vadd.f32 %v374, %v470
        %v503 = vadd.f32 %v375, %v471
        %v504 = vadd.f32 %v376, %v472
        %v505 = vadd.f32 %v377, %v473
        %v506 = vadd.f32 %v378, %v474
        %v507 = vadd.f32 %v379, %v475
        %v508 = vadd.f32 %v380, %v476
        %v509 = vadd.f32 %v381, %v477
        %v510 = vadd.f32 %v382, %v478
        %v511 = vadd.f32 %v383, %v479
        %v512 = vadd.f32 %v384, %v480
        %v513 = vadd.f32 %v385, %v481
        %v514 = vadd.f32 %v386, %v482
        %v515 = vadd.f32 %v387, %v483
        %v516 = vadd.f32 %v388, %v484
        %v517 = vadd.f32 %v389, %v485
        %v518 = vadd.f32 %v390, %v358
        %v519 = vadd.f32 %v391, %v359
        %v520 = vadd.f32 %v392, %v360
        %v521 = vadd.f32 %v393, %v361
        %v522 = vadd.f32 %v394, %v362
        %v523 = vadd.f32 %v395, %v363
        %v524 = vadd.f32 %v396, %v364
        %v525 = vadd.f32 %v397, %v365
        %v526 = vadd.f32 %v398, %v366
        %v527 = vadd.f32 %v399, %v367
        %v528 = vadd.f32 %v400, %v368
        %v529 = vadd.f32 %v401, %v369
        %v530 = vadd.f32 %v402, %v370
        %v531 = vadd.f32 %v403, %v371
        %v532 = vadd.f32 %v404, %v372
        %v533 = vadd.f32 %v405, %v373
        %v534 = vadd.f32 %v406, %v374
        %v535 = vadd.f32 %v407, %v375
        %v536 = vadd.f32 %v408, %v376
        %v537 = vadd.f32 %v409, %v377
        %v538 = vadd.f32 %v410, %v378
        %v539 = vadd.f32 %v411, %v379
        %v540 = vadd.f32 %v412, %v380
        %v541 = vadd.f32 %v413, %v381
        %v542 = vadd.f32 %v414, %v382
        %v543 = vadd.f32 %v415, %v383
        %v544 = vadd.f32 %v416, %v384
        %v545 = vadd.f32 %v417, %v385
        %v546 = vadd.f32 %v418, %v386
        %v547 = vadd.f32 %v419, %v387
        %v548 = vadd.f32 %v420, %v388
        %v549 = vadd.f32 %v421, %v389
        %v550 = vadd.f32 %v422, %v390
        %v551 = vadd.f32 %v423, %v391
        %v552 = vadd.f32 %v424, %v392
        %v553 = vadd.f32 %v425, %v393
        %v554 = vadd.f32 %v426, %v394
        %v555 = vadd.f32 %v427, %v395
        %v556 = vadd.f32 %v428, %v396
        %v557 = vadd.f32 %v429, %v397
        %v558 = vadd.f32 %v430, %v398
        %v559 = vadd.f32 %v431, %v399
        %v560 = vadd.f32 %v432, %v400
        %v561 = vadd.f32 %v433, %v401
        %v562 = vadd.f32 %v434, %v402
        %v563 = vadd.f32 %v435, %v403
        %v564 = vadd.f32 %v436, %v404
        %v565 = vadd.f32 %v437, %v405
        %v566 = vadd.f32 %v438, %v406
        %v567 = vadd.f32 %v439, %v407
        %v568 = vadd.f32 %v440, %v408
        %v569 = vadd.f32 %v441, %v409
        %v570 = vadd.f32 %v442, %v410
        %v571 = vadd.f32 %v443, %v411
        %v572 = vadd.f32 %v444, %v412
        %v573 = vadd.f32 %v445, %v413
        %v574 = vadd.f32 %v446, %v414
        %v575 = vadd.f32 %v447, %v415
        %v576 = vadd.f32 %v448, %v416
        %v577 = vadd.f32 %v449, %v417
        %v578 = vadd.f32 %v450, %v418
        %v579 = vadd.f32 %v451, %v419
        %v580 = vadd.f32 %v452, %v420
        %v581 = vadd.f32 %v453, %v421
        %v582 = vadd.f32 %v454, %v422
        %v583 = vadd.f32 %v455, %v423
        %v584 = vadd.f32 %v456, %v424
        %v585 = vadd.f32 %v457, %v425
        %v586 = vadd.f32 %v458, %v426
        %v587 = vadd.f32 %v459, %v427
        %v588 = vadd.f32 %v460, %v428
        %v589 = vadd.f32 %v461, %v429
        %v590 = vadd.f32 %v462, %v430
        %v591 = vadd.f32 %v463, %v431
        %v592 = vadd.f32 %v464, %v432
        %v593 = vadd.f32 %v465, %v433
        %v594 = vadd.f32 %v466, %v434
        %v595 = vadd.f32 %v467, %v435
        %v596 = vadd.f32 %v468, %v436
        %v597 = vadd.f32 %v469, %v437
        %v598 = vadd.f32 %v470, %v438
        %v599 = vadd.f32 %v471, %v439
        %v600 = vadd.f32 %v472, %v440
        %v601 = vadd.f32 %v473, %v441
        %v602 = vadd.f32 %v474, %v442
        %v603 = vadd.f32 %v475, %v443
        %v604 = vadd.f32 %v476, %v444
        %v605 = vadd.f32 %v477, %v445
        %v606 = vadd.f32 %v478, %v446
        %v607 = vadd.f32 %v479, %v447
        %v608 = vadd.f32 %v480, %v448
        %v609 = vadd.f32 %v481, %v449
        %v610 = vadd.f32 %v482, %v450
        %v611 = vadd.f32 %v483, %v451
        %v612 = vadd.f32 %v484, %v452
        %v613 = vadd.f32 %v485, %v453
        %v614 = vadd.f32 %v486, %v390
        %v615 = vadd.f32 %v487, %v391
        %v616 = vadd.f32 %v488, %v392
        %v617 = vadd.f32 %v489, %v393
        %v618 = vadd.f32 %v490, %v394
        %v619 = vadd.f32 %v491, %v395
        %v620 = vadd.f32 %v492, %v396
        %v621 = vadd.f32 %v493, %v397
        %v622 = vadd.f32 %v494, %v398
        %v623 = vadd.f32 %v495, %v399
        %v624 = vadd.f32 %v496, %v400
        %v625 = vadd.f32 %v497, %v401
        %v626 = vadd.f32 %v498, %v402
        %v627 = vadd.f32 %v499, %v403
        %v628 = vadd.f32 %v500, %v404
        %v629 = vadd.f32 %v501, %v405
        %v630 = vadd.f32 %v502, %v406
        %v631 = vadd.f32 %v503, %v407
        %v632 = vadd.f32 %v504, %v408
        %v633 = vadd.f32 %v505, %v409
        %v634 = vadd.f32 %v506, %v410
        %v635 = vadd.f32 %v507, %v411
        %v636 = vadd.f32 %v508, %v412
        %v637 = vadd.f32 %v509, %v413
        %v638 = vadd.f32 %v510, %v414
        %v639 = vadd.f32 %v511, %v415
        %v640 = vadd.f32 %v512, %v416
        %v641 = vadd.f32 %v513, %v417
        %v642 = vadd.f32 %v514, %v418
        %v643 = vadd.f32 %v515, %v419
        %v644 = vadd.f32 %v516, %v420
        %v645 = vadd.f32 %v517, %v421
        %v646 = vadd.f32 %v518, %v422
        %v647 = vadd.f32 %v519, %v423
        %v648 = vadd.f32 %v520, %v424
        %v649 = vadd.f32 %v521, %v425
        %v650 = vadd.f32 %v522, %v426
        %v651 = vadd.f32 %v523, %v427
        %v652 = vadd.f32 %v524, %v428
        %v653 = vadd.f32 %v525, %v429
        %v654 = vadd.f32 %v526, %v430
        %v655 = vadd.f32 %v527, %v431
        %v656 = vadd.f32 %v528, %v432
        %v657 = vadd.f32 %v529, %v433
        %v658 = vadd.f32 %v530, %v434
        %v659 = vadd.f32 %v531, %v435
        %v660 = vadd.f32 %v532, %v436
        %v661 = vadd.f32 %v533, %v437
        %v662 = vadd.f32 %v534, %v438
        %v663 = vadd.f32 %v535, %v439
        %v664 = vadd.f32 %v536, %v440
        %v665 = vadd.f32 %v537, %v441
        %v666 = vadd.f32 %v538, %v442
        %v667 = vadd.f32 %v539, %v443
        %v668 = vadd.f32 %v540, %v444
        %v669 = vadd.f32 %v541, %v445
        %v670 = vadd.f32 %v542, %v446
        %v671 = vadd.f32 %v543, %v447
        %v672 = vadd.f32 %v544, %v448
        %v673 = vadd.f32 %v545, %v449
        %v674 = vadd.f32 %v546, %v450
        %v675 = vadd.f32 %v547, %v451
        %v676 = vadd.f32 %v548, %v452
        %v677 = vadd.f32 %v549, %v453
        %v678 = vadd.f32 %v550, %v454
        %v679 = vadd.f32 %v551, %v455
        %v680 = vadd.f32 %v552, %v456
        %v681 = vadd.f32 %v553, %v457
        %v682 = vadd.f32 %v554, %v458
        %v683 = vadd.f32 %v555, %v459
        %v684 = vadd.f32 %v556, %v460
        %v685 = vadd.f32 %v557, %v461
        %v686 = vadd.f32 %v558, %v462
        %v687 = vadd.f32 %v559, %v463
        %v688 = vadd.f32 %v560, %v464
        %v689 = vadd.f32 %v561, %v465
        %v690 = vadd.f32 %v562, %v466
        %v691 = vadd.f32 %v563, %v467
        %v692 = vadd.f32 %v564, %v468
        %v693 = vadd.f32 %v565, %v469
        %v694 = vadd.f32 %v566, %v470
        %v695 = vadd.f32 %v567, %v471
        %v696 = vadd.f32 %v568, %v472
        %v697 = vadd.f32 %v569, %v473
        %v698 = vadd.f32 %v570, %v474
        %v699 = vadd.f32 %v571, %v475
        %v700 = vadd.f32 %v572, %v476
        %v701 = vadd.f32 %v573, %v477
        %v702 = vadd.f32 %v574, %v478
        %v703 = vadd.f32 %v575, %v479
        %v704 = vadd.f32 %v576, %v480
        %v705 = vadd.f32 %v577, %v481
        %v706 = vadd.f32 %v578, %v482
        %v707 = vadd.f32 %v579, %v483
        %v708 = vadd.f32 %v580, %v484
        %v709 = vadd.f32 %v581, %v485
        %v710 = vadd.f32 %v582, %v358
        %v711 = vadd.f32 %v583, %v359
        %v712 = vadd.f32 %v584, %v360
        %v713 = vadd.f32 %v585, %v361
        %v714 = vadd.f32 %v586, %v362
        %v715 = vadd.f32 %v587, %v363
        %v716 = vadd.f32 %v588, %v364
        %v717 = vadd.f32 %v589, %v365
        %v718 = vadd.f32 %v590, %v366
        %v719 = vadd.f32 %v591, %v367
        %v720 = vadd.f32 %v592, %v368
        %v721 = vadd.f32 %v593, %v369
        %v722 = vadd.f32 %v594, %v370
        %v723 = vadd.f32 %v595, %v371
        %v724 = vadd.f32 %v596, %v372
        %v725 = vadd.f32 %v597, %v373
        %v726 = vadd.f32 %v598, %v374
        %v727 = vadd.f32 %v599, %v375
        %v728 = vadd.f32 %v600, %v376
        %v729 = vadd.f32 %v601, %v377
        %v730 = vadd.f32 %v602, %v378
        %v731 = vadd.f32 %v603, %v379
        %v732 = vadd.f32 %v604, %v380
        %v733 = vadd.f32 %v605, %v381
        %v734 = vadd.f32 %v606, %v382
        %v735 = vadd.f32 %v607, %v383
        %v736 = vadd.f32 %v608, %v384
        %v737 = vadd.f32 %v609, %v385
        %v738 = vadd.f32 %v610, %v386
        %v739 = vadd.f32 %v611, %v387
        %v740 = vadd.f32 %v612, %v388
        %v741 = vadd.f32 %v613, %v389
        %v806 = vrot.slane %v616, 7
        %v807 = vrot.slane %v617, 7
        %v808 = vrot.slane %v620, 7
        %v809 = vrot.slane %v621, 7
        %v810 = vrot.slane %v624, 7
        %v811 = vrot.slane %v625, 7
        %v812 = vrot.slane %v628, 7
        %v813 = vrot.slane %v629, 7
        %v814 = vrot.slane %v632, 7
        %v815 = vrot.slane %v633, 7
        %v816 = vrot.slane %v636, 7
        %v817 = vrot.slane %v637, 7
        %v818 = vrot.slane %v640, 7
        %v819 = vrot.slane %v641, 7
        %v820 = vrot.slane %v644, 7
        %v821 = vrot.slane %v645, 7
        %v822 = vrot.slane %v648, 7
        %v823 = vrot.slane %v649, 7
        %v824 = vrot.slane %v652, 7
        %v825 = vrot.slane %v653, 7
        %v826 = vrot.slane %v656, 7
        %v827 = vrot.slane %v657, 7
        %v828 = vrot.slane %v660, 7
        %v829 = vrot.slane %v661, 7
        %v830 = vrot.slane %v664, 7
        %v831 = vrot.slane %v665, 7
        %v832 = vrot.slane %v668, 7
        %v833 = vrot.slane %v669, 7
        %v834 = vrot.slane %v672, 7
        %v835 = vrot.slane %v673, 7
        %v836 = vrot.slane %v676, 7
        %v837 = vrot.slane %v677, 7
        %v838 = vrot.slane %v680, 7
        %v839 = vrot.slane %v681, 7
        %v840 = vrot.slane %v684, 7
        %v841 = vrot.slane %v685, 7
        %v842 = vrot.slane %v688, 7
        %v843 = vrot.slane %v689, 7
        %v844 = vrot.slane %v692, 7
        %v845 = vrot.slane %v693, 7
        %v846 = vrot.slane %v696, 7
        %v847 = vrot.slane %v697, 7
        %v848 = vrot.slane %v700, 7
        %v849 = vrot.slane %v701, 7
        %v850 = vrot.slane %v704, 7
        %v851 = vrot.slane %v705, 7
        %v852 = vrot.slane %v708, 7
        %v853 = vrot.slane %v709, 7
        %v854 = vrot.slane %v712, 7
        %v855 = vrot.slane %v713, 7
        %v856 = vrot.slane %v716, 7
        %v857 = vrot.slane %v717, 7
        %v858 = vrot.slane %v720, 7
        %v859 = vrot.slane %v721, 7
        %v860 = vrot.slane %v724, 7
        %v861 = vrot.slane %v725, 7
        %v862 = vrot.slane %v728, 7
        %v863 = vrot.slane %v729, 7
        %v864 = vrot.slane %v732, 7
        %v865 = vrot.slane %v733, 7
        %v866 = vrot.slane %v736, 7
        %v867 = vrot.slane %v737, 7
        %v868 = vrot.slane %v740, 7
        %v869 = vrot.slane %v741, 7
        %vm998 = vcmask 1040384
        %v999 = vrot.slane %v614, 7
        %v1000 = vrot.slane %v615, 7
        %v1001 = vsel %vm998, %v999, %v806
        %v1002 = vsel %vm998, %v1000, %v807
        %v1003 = vrot.slane %v618, 7
        %v1004 = vrot.slane %v619, 7
        %v1005 = vsel %vm998, %v1003, %v808
        %v1006 = vsel %vm998, %v1004, %v809
        %v1007 = vrot.slane %v622, 7
        %v1008 = vrot.slane %v623, 7
        %v1009 = vsel %vm998, %v1007, %v810
        %v1010 = vsel %vm998, %v1008, %v811
        %v1011 = vrot.slane %v626, 7
        %v1012 = vrot.slane %v627, 7
        %v1013 = vsel %vm998, %v1011, %v812
        %v1014 = vsel %vm998, %v1012, %v813
        %v1015 = vrot.slane %v630, 7
        %v1016 = vrot.slane %v631, 7
        %v1017 = vsel %vm998, %v1015, %v814
        %v1018 = vsel %vm998, %v1016, %v815
        %v1019 = vrot.slane %v634, 7
        %v1020 = vrot.slane %v635, 7
        %v1021 = vsel %vm998, %v1019, %v816
        %v1022 = vsel %vm998, %v1020, %v817
        %v1023 = vrot.slane %v638, 7
        %v1024 = vrot.slane %v639, 7
        %v1025 = vsel %vm998, %v1023, %v818
        %v1026 = vsel %vm998, %v1024, %v819
        %v1027 = vrot.slane %v642, 7
        %v1028 = vrot.slane %v643, 7
        %v1029 = vsel %vm998, %v1027, %v820
        %v1030 = vsel %vm998, %v1028, %v821
        %v1031 = vrot.slane %v646, 7
        %v1032 = vrot.slane %v647, 7
        %v1033 = vsel %vm998, %v1031, %v822
        %v1034 = vsel %vm998, %v1032, %v823
        %v1035 = vrot.slane %v650, 7
        %v1036 = vrot.slane %v651, 7
        %v1037 = vsel %vm998, %v1035, %v824
        %v1038 = vsel %vm998, %v1036, %v825
        %v1039 = vrot.slane %v654, 7
        %v1040 = vrot.slane %v655, 7
        %v1041 = vsel %vm998, %v1039, %v826
        %v1042 = vsel %vm998, %v1040, %v827
        %v1043 = vrot.slane %v658, 7
        %v1044 = vrot.slane %v659, 7
        %v1045 = vsel %vm998, %v1043, %v828
        %v1046 = vsel %vm998, %v1044, %v829
        %v1047 = vrot.slane %v662, 7
        %v1048 = vrot.slane %v663, 7
        %v1049 = vsel %vm998, %v1047, %v830
        %v1050 = vsel %vm998, %v1048, %v831
        %v1051 = vrot.slane %v666, 7
        %v1052 = vrot.slane %v667, 7
        %v1053 = vsel %vm998, %v1051, %v832
        %v1054 = vsel %vm998, %v1052, %v833
        %v1055 = vrot.slane %v670, 7
        %v1056 = vrot.slane %v671, 7
        %v1057 = vsel %vm998, %v1055, %v834
        %v1058 = vsel %vm998, %v1056, %v835
        %v1059 = vrot.slane %v674, 7
        %v1060 = vrot.slane %v675, 7
        %v1061 = vsel %vm998, %v1059, %v836
        %v1062 = vsel %vm998, %v1060, %v837
        %v1063 = vrot.slane %v678, 7
        %v1064 = vrot.slane %v679, 7
        %v1065 = vsel %vm998, %v1063, %v838
        %v1066 = vsel %vm998, %v1064, %v839
        %v1067 = vrot.slane %v682, 7
        %v1068 = vrot.slane %v683, 7
        %v1069 = vsel %vm998, %v1067, %v840
        %v1070 = vsel %vm998, %v1068, %v841
        %v1071 = vrot.slane %v686, 7
        %v1072 = vrot.slane %v687, 7
        %v1073 = vsel %vm998, %v1071, %v842
        %v1074 = vsel %vm998, %v1072, %v843
        %v1075 = vrot.slane %v690, 7
        %v1076 = vrot.slane %v691, 7
        %v1077 = vsel %vm998, %v1075, %v844
        %v1078 = vsel %vm998, %v1076, %v845
        %v1079 = vrot.slane %v694, 7
        %v1080 = vrot.slane %v695, 7
        %v1081 = vsel %vm998, %v1079, %v846
        %v1082 = vsel %vm998, %v1080, %v847
        %v1083 = vrot.slane %v698, 7
        %v1084 = vrot.slane %v699, 7
        %v1085 = vsel %vm998, %v1083, %v848
        %v1086 = vsel %vm998, %v1084, %v849
        %v1087 = vrot.slane %v702, 7
        %v1088 = vrot.slane %v703, 7
        %v1089 = vsel %vm998, %v1087, %v850
        %v1090 = vsel %vm998, %v1088, %v851
        %v1091 = vrot.slane %v706, 7
        %v1092 = vrot.slane %v707, 7
        %v1093 = vsel %vm998, %v1091, %v852
        %v1094 = vsel %vm998, %v1092, %v853
        %v1095 = vrot.slane %v710, 7
        %v1096 = vrot.slane %v711, 7
        %v1097 = vsel %vm998, %v1095, %v854
        %v1098 = vsel %vm998, %v1096, %v855
        %v1099 = vrot.slane %v714, 7
        %v1100 = vrot.slane %v715, 7
        %v1101 = vsel %vm998, %v1099, %v856
        %v1102 = vsel %vm998, %v1100, %v857
        %v1103 = vrot.slane %v718, 7
        %v1104 = vrot.slane %v719, 7
        %v1105 = vsel %vm998, %v1103, %v858
        %v1106 = vsel %vm998, %v1104, %v859
        %v1107 = vrot.slane %v722, 7
        %v1108 = vrot.slane %v723, 7
        %v1109 = vsel %vm998, %v1107, %v860
        %v1110 = vsel %vm998, %v1108, %v861
        %v1111 = vrot.slane %v726, 7
        %v1112 = vrot.slane %v727, 7
        %v1113 = vsel %vm998, %v1111, %v862
        %v1114 = vsel %vm998, %v1112, %v863
        %v1115 = vrot.slane %v730, 7
        %v1116 = vrot.slane %v731, 7
        %v1117 = vsel %vm998, %v1115, %v864
        %v1118 = vsel %vm998, %v1116, %v865
        %v1119 = vrot.slane %v734, 7
        %v1120 = vrot.slane %v735, 7
        %v1121 = vsel %vm998, %v1119, %v866
        %v1122 = vsel %vm998, %v1120, %v867
        %v1123 = vrot.slane %v738, 7
        %v1124 = vrot.slane %v739, 7
        %v1125 = vsel %vm998, %v1123, %v868
        %v1126 = vsel %vm998, %v1124, %v869
        %v1255 = vsel %vm998, %v806, %v999
        %v1256 = vsel %vm998, %v807, %v1000
        %v1257 = vsel %vm998, %v808, %v1003
        %v1258 = vsel %vm998, %v809, %v1004
        %v1259 = vsel %vm998, %v810, %v1007
        %v1260 = vsel %vm998, %v811, %v1008
        %v1261 = vsel %vm998, %v812, %v1011
        %v1262 = vsel %vm998, %v813, %v1012
        %v1263 = vsel %vm998, %v814, %v1015
        %v1264 = vsel %vm998, %v815, %v1016
        %v1265 = vsel %vm998, %v816, %v1019
        %v1266 = vsel %vm998, %v817, %v1020
        %v1267 = vsel %vm998, %v818, %v1023
        %v1268 = vsel %vm998, %v819, %v1024
        %v1269 = vsel %vm998, %v820, %v1027
        %v1270 = vsel %vm998, %v821, %v1028
        %v1271 = vsel %vm998, %v822, %v1031
        %v1272 = vsel %vm998, %v823, %v1032
        %v1273 = vsel %vm998, %v824, %v1035
        %v1274 = vsel %vm998, %v825, %v1036
        %v1275 = vsel %vm998, %v826, %v1039
        %v1276 = vsel %vm998, %v827, %v1040
        %v1277 = vsel %vm998, %v828, %v1043
        %v1278 = vsel %vm998, %v829, %v1044
        %v1279 = vsel %vm998, %v830, %v1047
        %v1280 = vsel %vm998, %v831, %v1048
        %v1281 = vsel %vm998, %v832, %v1051
        %v1282 = vsel %vm998, %v833, %v1052
        %v1283 = vsel %vm998, %v834, %v1055
        %v1284 = vsel %vm998, %v835, %v1056
        %v1285 = vsel %vm998, %v836, %v1059
        %v1286 = vsel %vm998, %v837, %v1060
        %v1287 = vsel %vm998, %v838, %v1063
        %v1288 = vsel %vm998, %v839, %v1064
        %v1289 = vsel %vm998, %v840, %v1067
        %v1290 = vsel %vm998, %v841, %v1068
        %v1291 = vsel %vm998, %v842, %v1071
        %v1292 = vsel %vm998, %v843, %v1072
        %v1293 = vsel %vm998, %v844, %v1075
        %v1294 = vsel %vm998, %v845, %v1076
        %v1295 = vsel %vm998, %v846, %v1079
        %v1296 = vsel %vm998, %v847, %v1080
        %v1297 = vsel %vm998, %v848, %v1083
        %v1298 = vsel %vm998, %v849, %v1084
        %v1299 = vsel %vm998, %v850, %v1087
        %v1300 = vsel %vm998, %v851, %v1088
        %v1301 = vsel %vm998, %v852, %v1091
        %v1302 = vsel %vm998, %v853, %v1092
        %v1303 = vsel %vm998, %v854, %v1095
        %v1304 = vsel %vm998, %v855, %v1096
        %v1305 = vsel %vm998, %v856, %v1099
        %v1306 = vsel %vm998, %v857, %v1100
        %v1307 = vsel %vm998, %v858, %v1103
        %v1308 = vsel %vm998, %v859, %v1104
        %v1309 = vsel %vm998, %v860, %v1107
        %v1310 = vsel %vm998, %v861, %v1108
        %v1311 = vsel %vm998, %v862, %v1111
        %v1312 = vsel %vm998, %v863, %v1112
        %v1313 = vsel %vm998, %v864, %v1115
        %v1314 = vsel %vm998, %v865, %v1116
        %v1315 = vsel %vm998, %v866, %v1119
        %v1316 = vsel %vm998, %v867, %v1120
        %v1317 = vsel %vm998, %v868, %v1123
        %v1318 = vsel %vm998, %v869, %v1124
        %v1319 = vadd.f32 %v614, %v1255
        %v1320 = vadd.f32 %v615, %v1256
        %v1321 = vadd.f32 %v616, %v1001
        %v1322 = vadd.f32 %v617, %v1002
        %v1323 = vadd.f32 %v618, %v1257
        %v1324 = vadd.f32 %v619, %v1258
        %v1325 = vadd.f32 %v620, %v1005
        %v1326 = vadd.f32 %v621, %v1006
        %v1327 = vadd.f32 %v622, %v1259
        %v1328 = vadd.f32 %v623, %v1260
        %v1329 = vadd.f32 %v624, %v1009
        %v1330 = vadd.f32 %v625, %v1010
        %v1331 = vadd.f32 %v626, %v1261
        %v1332 = vadd.f32 %v627, %v1262
        %v1333 = vadd.f32 %v628, %v1013
        %v1334 = vadd.f32 %v629, %v1014
        %v1335 = vadd.f32 %v630, %v1263
        %v1336 = vadd.f32 %v631, %v1264
        %v1337 = vadd.f32 %v632, %v1017
        %v1338 = vadd.f32 %v633, %v1018
        %v1339 = vadd.f32 %v634, %v1265
        %v1340 = vadd.f32 %v635, %v1266
        %v1341 = vadd.f32 %v636, %v1021
        %v1342 = vadd.f32 %v637, %v1022
        %v1343 = vadd.f32 %v638, %v1267
        %v1344 = vadd.f32 %v639, %v1268
        %v1345 = vadd.f32 %v640, %v1025
        %v1346 = vadd.f32 %v641, %v1026
        %v1347 = vadd.f32 %v642, %v1269
        %v1348 = vadd.f32 %v643, %v1270
        %v1349 = vadd.f32 %v644, %v1029
        %v1350 = vadd.f32 %v645, %v1030
        %v1351 = vadd.f32 %v646, %v1271
        %v1352 = vadd.f32 %v647, %v1272
        %v1353 = vadd.f32 %v648, %v1033
        %v1354 = vadd.f32 %v649, %v1034
        %v1355 = vadd.f32 %v650, %v1273
        %v1356 = vadd.f32 %v651, %v1274
        %v1357 = vadd.f32 %v652, %v1037
        %v1358 = vadd.f32 %v653, %v1038
        %v1359 = vadd.f32 %v654, %v1275
        %v1360 = vadd.f32 %v655, %v1276
        %v1361 = vadd.f32 %v656, %v1041
        %v1362 = vadd.f32 %v657, %v1042
        %v1363 = vadd.f32 %v658, %v1277
        %v1364 = vadd.f32 %v659, %v1278
        %v1365 = vadd.f32 %v660, %v1045
        %v1366 = vadd.f32 %v661, %v1046
        %v1367 = vadd.f32 %v662, %v1279
        %v1368 = vadd.f32 %v663, %v1280
        %v1369 = vadd.f32 %v664, %v1049
        %v1370 = vadd.f32 %v665, %v1050
        %v1371 = vadd.f32 %v666, %v1281
        %v1372 = vadd.f32 %v667, %v1282
        %v1373 = vadd.f32 %v668, %v1053
        %v1374 = vadd.f32 %v669, %v1054
        %v1375 = vadd.f32 %v670, %v1283
        %v1376 = vadd.f32 %v671, %v1284
        %v1377 = vadd.f32 %v672, %v1057
        %v1378 = vadd.f32 %v673, %v1058
        %v1379 = vadd.f32 %v674, %v1285
        %v1380 = vadd.f32 %v675, %v1286
        %v1381 = vadd.f32 %v676, %v1061
        %v1382 = vadd.f32 %v677, %v1062
        %v1383 = vadd.f32 %v678, %v1287
        %v1384 = vadd.f32 %v679, %v1288
        %v1385 = vadd.f32 %v680, %v1065
        %v1386 = vadd.f32 %v681, %v1066
        %v1387 = vadd.f32 %v682, %v1289
        %v1388 = vadd.f32 %v683, %v1290
        %v1389 = vadd.f32 %v684, %v1069
        %v1390 = vadd.f32 %v685, %v1070
        %v1391 = vadd.f32 %v686, %v1291
        %v1392 = vadd.f32 %v687, %v1292
        %v1393 = vadd.f32 %v688, %v1073
        %v1394 = vadd.f32 %v689, %v1074
        %v1395 = vadd.f32 %v690, %v1293
        %v1396 = vadd.f32 %v691, %v1294
        %v1397 = vadd.f32 %v692, %v1077
        %v1398 = vadd.f32 %v693, %v1078
        %v1399 = vadd.f32 %v694, %v1295
        %v1400 = vadd.f32 %v695, %v1296
        %v1401 = vadd.f32 %v696, %v1081
        %v1402 = vadd.f32 %v697, %v1082
        %v1403 = vadd.f32 %v698, %v1297
        %v1404 = vadd.f32 %v699, %v1298
        %v1405 = vadd.f32 %v700, %v1085
        %v1406 = vadd.f32 %v701, %v1086
        %v1407 = vadd.f32 %v702, %v1299
        %v1408 = vadd.f32 %v703, %v1300
        %v1409 = vadd.f32 %v704, %v1089
        %v1410 = vadd.f32 %v705, %v1090
        %v1411 = vadd.f32 %v706, %v1301
        %v1412 = vadd.f32 %v707, %v1302
        %v1413 = vadd.f32 %v708, %v1093
        %v1414 = vadd.f32 %v709, %v1094
        %v1415 = vadd.f32 %v710, %v1303
        %v1416 = vadd.f32 %v711, %v1304
        %v1417 = vadd.f32 %v712, %v1097
        %v1418 = vadd.f32 %v713, %v1098
        %v1419 = vadd.f32 %v714, %v1305
        %v1420 = vadd.f32 %v715, %v1306
        %v1421 = vadd.f32 %v716, %v1101
        %v1422 = vadd.f32 %v717, %v1102
        %v1423 = vadd.f32 %v718, %v1307
        %v1424 = vadd.f32 %v719, %v1308
        %v1425 = vadd.f32 %v720, %v1105
        %v1426 = vadd.f32 %v721, %v1106
        %v1427 = vadd.f32 %v722, %v1309
        %v1428 = vadd.f32 %v723, %v1310
        %v1429 = vadd.f32 %v724, %v1109
        %v1430 = vadd.f32 %v725, %v1110
        %v1431 = vadd.f32 %v726, %v1311
        %v1432 = vadd.f32 %v727, %v1312
        %v1433 = vadd.f32 %v728, %v1113
        %v1434 = vadd.f32 %v729, %v1114
        %v1435 = vadd.f32 %v730, %v1313
        %v1436 = vadd.f32 %v731, %v1314
        %v1437 = vadd.f32 %v732, %v1117
        %v1438 = vadd.f32 %v733, %v1118
        %v1439 = vadd.f32 %v734, %v1315
        %v1440 = vadd.f32 %v735, %v1316
        %v1441 = vadd.f32 %v736, %v1121
        %v1442 = vadd.f32 %v737, %v1122
        %v1443 = vadd.f32 %v738, %v1317
        %v1444 = vadd.f32 %v739, %v1318
        %v1445 = vadd.f32 %v740, %v1125
        %v1446 = vadd.f32 %v741, %v1126
        %vm1447 = vcmask 1046528
        %v1448 = vrot.slane %v614, 1
        %v1449 = vrot.slane %v616, 1
        %v1450 = vsel %vm1447, %v1448, %v1449
        %v1451 = vrot.slane %v615, 1
        %v1452 = vrot.slane %v617, 1
        %v1453 = vsel %vm1447, %v1451, %v1452
        %v1454 = vrot.slane %v618, 1
        %v1455 = vrot.slane %v620, 1
        %v1456 = vsel %vm1447, %v1454, %v1455
        %v1457 = vrot.slane %v619, 1
        %v1458 = vrot.slane %v621, 1
        %v1459 = vsel %vm1447, %v1457, %v1458
        %v1460 = vrot.slane %v622, 1
        %v1461 = vrot.slane %v624, 1
        %v1462 = vsel %vm1447, %v1460, %v1461
        %v1463 = vrot.slane %v623, 1
        %v1464 = vrot.slane %v625, 1
        %v1465 = vsel %vm1447, %v1463, %v1464
        %v1466 = vrot.slane %v626, 1
        %v1467 = vrot.slane %v628, 1
        %v1468 = vsel %vm1447, %v1466, %v1467
        %v1469 = vrot.slane %v627, 1
        %v1470 = vrot.slane %v629, 1
        %v1471 = vsel %vm1447, %v1469, %v1470
        %v1472 = vrot.slane %v630, 1
        %v1473 = vrot.slane %v632, 1
        %v1474 = vsel %vm1447, %v1472, %v1473
        %v1475 = vrot.slane %v631, 1
        %v1476 = vrot.slane %v633, 1
        %v1477 = vsel %vm1447, %v1475, %v1476
        %v1478 = vrot.slane %v634, 1
        %v1479 = vrot.slane %v636, 1
        %v1480 = vsel %vm1447, %v1478, %v1479
        %v1481 = vrot.slane %v635, 1
        %v1482 = vrot.slane %v637, 1
        %v1483 = vsel %vm1447, %v1481, %v1482
        %v1484 = vrot.slane %v638, 1
        %v1485 = vrot.slane %v640, 1
        %v1486 = vsel %vm1447, %v1484, %v1485
        %v1487 = vrot.slane %v639, 1
        %v1488 = vrot.slane %v641, 1
        %v1489 = vsel %vm1447, %v1487, %v1488
        %v1490 = vrot.slane %v642, 1
        %v1491 = vrot.slane %v644, 1
        %v1492 = vsel %vm1447, %v1490, %v1491
        %v1493 = vrot.slane %v643, 1
        %v1494 = vrot.slane %v645, 1
        %v1495 = vsel %vm1447, %v1493, %v1494
        %v1496 = vrot.slane %v646, 1
        %v1497 = vrot.slane %v648, 1
        %v1498 = vsel %vm1447, %v1496, %v1497
        %v1499 = vrot.slane %v647, 1
        %v1500 = vrot.slane %v649, 1
        %v1501 = vsel %vm1447, %v1499, %v1500
        %v1502 = vrot.slane %v650, 1
        %v1503 = vrot.slane %v652, 1
        %v1504 = vsel %vm1447, %v1502, %v1503
        %v1505 = vrot.slane %v651, 1
        %v1506 = vrot.slane %v653, 1
        %v1507 = vsel %vm1447, %v1505, %v1506
        %v1508 = vrot.slane %v654, 1
        %v1509 = vrot.slane %v656, 1
        %v1510 = vsel %vm1447, %v1508, %v1509
        %v1511 = vrot.slane %v655, 1
        %v1512 = vrot.slane %v657, 1
        %v1513 = vsel %vm1447, %v1511, %v1512
        %v1514 = vrot.slane %v658, 1
        %v1515 = vrot.slane %v660, 1
        %v1516 = vsel %vm1447, %v1514, %v1515
        %v1517 = vrot.slane %v659, 1
        %v1518 = vrot.slane %v661, 1
        %v1519 = vsel %vm1447, %v1517, %v1518
        %v1520 = vrot.slane %v662, 1
        %v1521 = vrot.slane %v664, 1
        %v1522 = vsel %vm1447, %v1520, %v1521
        %v1523 = vrot.slane %v663, 1
        %v1524 = vrot.slane %v665, 1
        %v1525 = vsel %vm1447, %v1523, %v1524
        %v1526 = vrot.slane %v666, 1
        %v1527 = vrot.slane %v668, 1
        %v1528 = vsel %vm1447, %v1526, %v1527
        %v1529 = vrot.slane %v667, 1
        %v1530 = vrot.slane %v669, 1
        %v1531 = vsel %vm1447, %v1529, %v1530
        %v1532 = vrot.slane %v670, 1
        %v1533 = vrot.slane %v672, 1
        %v1534 = vsel %vm1447, %v1532, %v1533
        %v1535 = vrot.slane %v671, 1
        %v1536 = vrot.slane %v673, 1
        %v1537 = vsel %vm1447, %v1535, %v1536
        %v1538 = vrot.slane %v674, 1
        %v1539 = vrot.slane %v676, 1
        %v1540 = vsel %vm1447, %v1538, %v1539
        %v1541 = vrot.slane %v675, 1
        %v1542 = vrot.slane %v677, 1
        %v1543 = vsel %vm1447, %v1541, %v1542
        %v1544 = vrot.slane %v678, 1
        %v1545 = vrot.slane %v680, 1
        %v1546 = vsel %vm1447, %v1544, %v1545
        %v1547 = vrot.slane %v679, 1
        %v1548 = vrot.slane %v681, 1
        %v1549 = vsel %vm1447, %v1547, %v1548
        %v1550 = vrot.slane %v682, 1
        %v1551 = vrot.slane %v684, 1
        %v1552 = vsel %vm1447, %v1550, %v1551
        %v1553 = vrot.slane %v683, 1
        %v1554 = vrot.slane %v685, 1
        %v1555 = vsel %vm1447, %v1553, %v1554
        %v1556 = vrot.slane %v686, 1
        %v1557 = vrot.slane %v688, 1
        %v1558 = vsel %vm1447, %v1556, %v1557
        %v1559 = vrot.slane %v687, 1
        %v1560 = vrot.slane %v689, 1
        %v1561 = vsel %vm1447, %v1559, %v1560
        %v1562 = vrot.slane %v690, 1
        %v1563 = vrot.slane %v692, 1
        %v1564 = vsel %vm1447, %v1562, %v1563
        %v1565 = vrot.slane %v691, 1
        %v1566 = vrot.slane %v693, 1
        %v1567 = vsel %vm1447, %v1565, %v1566
        %v1568 = vrot.slane %v694, 1
        %v1569 = vrot.slane %v696, 1
        %v1570 = vsel %vm1447, %v1568, %v1569
        %v1571 = vrot.slane %v695, 1
        %v1572 = vrot.slane %v697, 1
        %v1573 = vsel %vm1447, %v1571, %v1572
        %v1574 = vrot.slane %v698, 1
        %v1575 = vrot.slane %v700, 1
        %v1576 = vsel %vm1447, %v1574, %v1575
        %v1577 = vrot.slane %v699, 1
        %v1578 = vrot.slane %v701, 1
        %v1579 = vsel %vm1447, %v1577, %v1578
        %v1580 = vrot.slane %v702, 1
        %v1581 = vrot.slane %v704, 1
        %v1582 = vsel %vm1447, %v1580, %v1581
        %v1583 = vrot.slane %v703, 1
        %v1584 = vrot.slane %v705, 1
        %v1585 = vsel %vm1447, %v1583, %v1584
        %v1586 = vrot.slane %v706, 1
        %v1587 = vrot.slane %v708, 1
        %v1588 = vsel %vm1447, %v1586, %v1587
        %v1589 = vrot.slane %v707, 1
        %v1590 = vrot.slane %v709, 1
        %v1591 = vsel %vm1447, %v1589, %v1590
        %v1592 = vrot.slane %v710, 1
        %v1593 = vrot.slane %v712, 1
        %v1594 = vsel %vm1447, %v1592, %v1593
        %v1595 = vrot.slane %v711, 1
        %v1596 = vrot.slane %v713, 1
        %v1597 = vsel %vm1447, %v1595, %v1596
        %v1598 = vrot.slane %v714, 1
        %v1599 = vrot.slane %v716, 1
        %v1600 = vsel %vm1447, %v1598, %v1599
        %v1601 = vrot.slane %v715, 1
        %v1602 = vrot.slane %v717, 1
        %v1603 = vsel %vm1447, %v1601, %v1602
        %v1604 = vrot.slane %v718, 1
        %v1605 = vrot.slane %v720, 1
        %v1606 = vsel %vm1447, %v1604, %v1605
        %v1607 = vrot.slane %v719, 1
        %v1608 = vrot.slane %v721, 1
        %v1609 = vsel %vm1447, %v1607, %v1608
        %v1610 = vrot.slane %v722, 1
        %v1611 = vrot.slane %v724, 1
        %v1612 = vsel %vm1447, %v1610, %v1611
        %v1613 = vrot.slane %v723, 1
        %v1614 = vrot.slane %v725, 1
        %v1615 = vsel %vm1447, %v1613, %v1614
        %v1616 = vrot.slane %v726, 1
        %v1617 = vrot.slane %v728, 1
        %v1618 = vsel %vm1447, %v1616, %v1617
        %v1619 = vrot.slane %v727, 1
        %v1620 = vrot.slane %v729, 1
        %v1621 = vsel %vm1447, %v1619, %v1620
        %v1622 = vrot.slane %v730, 1
        %v1623 = vrot.slane %v732, 1
        %v1624 = vsel %vm1447, %v1622, %v1623
        %v1625 = vrot.slane %v731, 1
        %v1626 = vrot.slane %v733, 1
        %v1627 = vsel %vm1447, %v1625, %v1626
        %v1628 = vrot.slane %v734, 1
        %v1629 = vrot.slane %v736, 1
        %v1630 = vsel %vm1447, %v1628, %v1629
        %v1631 = vrot.slane %v735, 1
        %v1632 = vrot.slane %v737, 1
        %v1633 = vsel %vm1447, %v1631, %v1632
        %v1634 = vrot.slane %v738, 1
        %v1635 = vrot.slane %v740, 1
        %v1636 = vsel %vm1447, %v1634, %v1635
        %v1637 = vrot.slane %v739, 1
        %v1638 = vrot.slane %v741, 1
        %v1639 = vsel %vm1447, %v1637, %v1638
        %v1832 = vsel %vm1447, %v1449, %v1448
        %v1833 = vsel %vm1447, %v1452, %v1451
        %v1834 = vsel %vm1447, %v1455, %v1454
        %v1835 = vsel %vm1447, %v1458, %v1457
        %v1836 = vsel %vm1447, %v1461, %v1460
        %v1837 = vsel %vm1447, %v1464, %v1463
        %v1838 = vsel %vm1447, %v1467, %v1466
        %v1839 = vsel %vm1447, %v1470, %v1469
        %v1840 = vsel %vm1447, %v1473, %v1472
        %v1841 = vsel %vm1447, %v1476, %v1475
        %v1842 = vsel %vm1447, %v1479, %v1478
        %v1843 = vsel %vm1447, %v1482, %v1481
        %v1844 = vsel %vm1447, %v1485, %v1484
        %v1845 = vsel %vm1447, %v1488, %v1487
        %v1846 = vsel %vm1447, %v1491, %v1490
        %v1847 = vsel %vm1447, %v1494, %v1493
        %v1848 = vsel %vm1447, %v1497, %v1496
        %v1849 = vsel %vm1447, %v1500, %v1499
        %v1850 = vsel %vm1447, %v1503, %v1502
        %v1851 = vsel %vm1447, %v1506, %v1505
        %v1852 = vsel %vm1447, %v1509, %v1508
        %v1853 = vsel %vm1447, %v1512, %v1511
        %v1854 = vsel %vm1447, %v1515, %v1514
        %v1855 = vsel %vm1447, %v1518, %v1517
        %v1856 = vsel %vm1447, %v1521, %v1520
        %v1857 = vsel %vm1447, %v1524, %v1523
        %v1858 = vsel %vm1447, %v1527, %v1526
        %v1859 = vsel %vm1447, %v1530, %v1529
        %v1860 = vsel %vm1447, %v1533, %v1532
        %v1861 = vsel %vm1447, %v1536, %v1535
        %v1862 = vsel %vm1447, %v1539, %v1538
        %v1863 = vsel %vm1447, %v1542, %v1541
        %v1864 = vsel %vm1447, %v1545, %v1544
        %v1865 = vsel %vm1447, %v1548, %v1547
        %v1866 = vsel %vm1447, %v1551, %v1550
        %v1867 = vsel %vm1447, %v1554, %v1553
        %v1868 = vsel %vm1447, %v1557, %v1556
        %v1869 = vsel %vm1447, %v1560, %v1559
        %v1870 = vsel %vm1447, %v1563, %v1562
        %v1871 = vsel %vm1447, %v1566, %v1565
        %v1872 = vsel %vm1447, %v1569, %v1568
        %v1873 = vsel %vm1447, %v1572, %v1571
        %v1874 = vsel %vm1447, %v1575, %v1574
        %v1875 = vsel %vm1447, %v1578, %v1577
        %v1876 = vsel %vm1447, %v1581, %v1580
        %v1877 = vsel %vm1447, %v1584, %v1583
        %v1878 = vsel %vm1447, %v1587, %v1586
        %v1879 = vsel %vm1447, %v1590, %v1589
        %v1880 = vsel %vm1447, %v1593, %v1592
        %v1881 = vsel %vm1447, %v1596, %v1595
        %v1882 = vsel %vm1447, %v1599, %v1598
        %v1883 = vsel %vm1447, %v1602, %v1601
        %v1884 = vsel %vm1447, %v1605, %v1604
        %v1885 = vsel %vm1447, %v1608, %v1607
        %v1886 = vsel %vm1447, %v1611, %v1610
        %v1887 = vsel %vm1447, %v1614, %v1613
        %v1888 = vsel %vm1447, %v1617, %v1616
        %v1889 = vsel %vm1447, %v1620, %v1619
        %v1890 = vsel %vm1447, %v1623, %v1622
        %v1891 = vsel %vm1447, %v1626, %v1625
        %v1892 = vsel %vm1447, %v1629, %v1628
        %v1893 = vsel %vm1447, %v1632, %v1631
        %v1894 = vsel %vm1447, %v1635, %v1634
        %v1895 = vsel %vm1447, %v1638, %v1637
        %v1896 = vadd.f32 %v1319, %v1450
        %v1897 = vadd.f32 %v1320, %v1453
        %v1898 = vadd.f32 %v1321, %v1832
        %v1899 = vadd.f32 %v1322, %v1833
        %v1900 = vadd.f32 %v1323, %v1456
        %v1901 = vadd.f32 %v1324, %v1459
        %v1902 = vadd.f32 %v1325, %v1834
        %v1903 = vadd.f32 %v1326, %v1835
        %v1904 = vadd.f32 %v1327, %v1462
        %v1905 = vadd.f32 %v1328, %v1465
        %v1906 = vadd.f32 %v1329, %v1836
        %v1907 = vadd.f32 %v1330, %v1837
        %v1908 = vadd.f32 %v1331, %v1468
        %v1909 = vadd.f32 %v1332, %v1471
        %v1910 = vadd.f32 %v1333, %v1838
        %v1911 = vadd.f32 %v1334, %v1839
        %v1912 = vadd.f32 %v1335, %v1474
        %v1913 = vadd.f32 %v1336, %v1477
        %v1914 = vadd.f32 %v1337, %v1840
        %v1915 = vadd.f32 %v1338, %v1841
        %v1916 = vadd.f32 %v1339, %v1480
        %v1917 = vadd.f32 %v1340, %v1483
        %v1918 = vadd.f32 %v1341, %v1842
        %v1919 = vadd.f32 %v1342, %v1843
        %v1920 = vadd.f32 %v1343, %v1486
        %v1921 = vadd.f32 %v1344, %v1489
        %v1922 = vadd.f32 %v1345, %v1844
        %v1923 = vadd.f32 %v1346, %v1845
        %v1924 = vadd.f32 %v1347, %v1492
        %v1925 = vadd.f32 %v1348, %v1495
        %v1926 = vadd.f32 %v1349, %v1846
        %v1927 = vadd.f32 %v1350, %v1847
        %v1928 = vadd.f32 %v1351, %v1498
        %v1929 = vadd.f32 %v1352, %v1501
        %v1930 = vadd.f32 %v1353, %v1848
        %v1931 = vadd.f32 %v1354, %v1849
        %v1932 = vadd.f32 %v1355, %v1504
        %v1933 = vadd.f32 %v1356, %v1507
        %v1934 = vadd.f32 %v1357, %v1850
        %v1935 = vadd.f32 %v1358, %v1851
        %v1936 = vadd.f32 %v1359, %v1510
        %v1937 = vadd.f32 %v1360, %v1513
        %v1938 = vadd.f32 %v1361, %v1852
        %v1939 = vadd.f32 %v1362, %v1853
        %v1940 = vadd.f32 %v1363, %v1516
        %v1941 = vadd.f32 %v1364, %v1519
        %v1942 = vadd.f32 %v1365, %v1854
        %v1943 = vadd.f32 %v1366, %v1855
        %v1944 = vadd.f32 %v1367, %v1522
        %v1945 = vadd.f32 %v1368, %v1525
        %v1946 = vadd.f32 %v1369, %v1856
        %v1947 = vadd.f32 %v1370, %v1857
        %v1948 = vadd.f32 %v1371, %v1528
        %v1949 = vadd.f32 %v1372, %v1531
        %v1950 = vadd.f32 %v1373, %v1858
        %v1951 = vadd.f32 %v1374, %v1859
        %v1952 = vadd.f32 %v1375, %v1534
        %v1953 = vadd.f32 %v1376, %v1537
        %v1954 = vadd.f32 %v1377, %v1860
        %v1955 = vadd.f32 %v1378, %v1861
        %v1956 = vadd.f32 %v1379, %v1540
        %v1957 = vadd.f32 %v1380, %v1543
        %v1958 = vadd.f32 %v1381, %v1862
        %v1959 = vadd.f32 %v1382, %v1863
        %v1960 = vadd.f32 %v1383, %v1546
        %v1961 = vadd.f32 %v1384, %v1549
        %v1962 = vadd.f32 %v1385, %v1864
        %v1963 = vadd.f32 %v1386, %v1865
        %v1964 = vadd.f32 %v1387, %v1552
        %v1965 = vadd.f32 %v1388, %v1555
        %v1966 = vadd.f32 %v1389, %v1866
        %v1967 = vadd.f32 %v1390, %v1867
        %v1968 = vadd.f32 %v1391, %v1558
        %v1969 = vadd.f32 %v1392, %v1561
        %v1970 = vadd.f32 %v1393, %v1868
        %v1971 = vadd.f32 %v1394, %v1869
        %v1972 = vadd.f32 %v1395, %v1564
        %v1973 = vadd.f32 %v1396, %v1567
        %v1974 = vadd.f32 %v1397, %v1870
        %v1975 = vadd.f32 %v1398, %v1871
        %v1976 = vadd.f32 %v1399, %v1570
        %v1977 = vadd.f32 %v1400, %v1573
        %v1978 = vadd.f32 %v1401, %v1872
        %v1979 = vadd.f32 %v1402, %v1873
        %v1980 = vadd.f32 %v1403, %v1576
        %v1981 = vadd.f32 %v1404, %v1579
        %v1982 = vadd.f32 %v1405, %v1874
        %v1983 = vadd.f32 %v1406, %v1875
        %v1984 = vadd.f32 %v1407, %v1582
        %v1985 = vadd.f32 %v1408, %v1585
        %v1986 = vadd.f32 %v1409, %v1876
        %v1987 = vadd.f32 %v1410, %v1877
        %v1988 = vadd.f32 %v1411, %v1588
        %v1989 = vadd.f32 %v1412, %v1591
        %v1990 = vadd.f32 %v1413, %v1878
        %v1991 = vadd.f32 %v1414, %v1879
        %v1992 = vadd.f32 %v1415, %v1594
        %v1993 = vadd.f32 %v1416, %v1597
        %v1994 = vadd.f32 %v1417, %v1880
        %v1995 = vadd.f32 %v1418, %v1881
        %v1996 = vadd.f32 %v1419, %v1600
        %v1997 = vadd.f32 %v1420, %v1603
        %v1998 = vadd.f32 %v1421, %v1882
        %v1999 = vadd.f32 %v1422, %v1883
        %v2000 = vadd.f32 %v1423, %v1606
        %v2001 = vadd.f32 %v1424, %v1609
        %v2002 = vadd.f32 %v1425, %v1884
        %v2003 = vadd.f32 %v1426, %v1885
        %v2004 = vadd.f32 %v1427, %v1612
        %v2005 = vadd.f32 %v1428, %v1615
        %v2006 = vadd.f32 %v1429, %v1886
        %v2007 = vadd.f32 %v1430, %v1887
        %v2008 = vadd.f32 %v1431, %v1618
        %v2009 = vadd.f32 %v1432, %v1621
        %v2010 = vadd.f32 %v1433, %v1888
        %v2011 = vadd.f32 %v1434, %v1889
        %v2012 = vadd.f32 %v1435, %v1624
        %v2013 = vadd.f32 %v1436, %v1627
        %v2014 = vadd.f32 %v1437, %v1890
        %v2015 = vadd.f32 %v1438, %v1891
        %v2016 = vadd.f32 %v1439, %v1630
        %v2017 = vadd.f32 %v1440, %v1633
        %v2018 = vadd.f32 %v1441, %v1892
        %v2019 = vadd.f32 %v1442, %v1893
        %v2020 = vadd.f32 %v1443, %v1636
        %v2021 = vadd.f32 %v1444, %v1639
        %v2022 = vadd.f32 %v1445, %v1894
        %v2023 = vadd.f32 %v1446, %v1895
        %v2024 = vadd.f32 %v1896, 1e-06
        %v2025 = vadd.f32 %v1897, 1e-06
        %v2026 = vadd.f32 %v1898, 1e-06
        %v2027 = vadd.f32 %v1899, 1e-06
        %v2028 = vadd.f32 %v1900, 1e-06
        %v2029 = vadd.f32 %v1901, 1e-06
        %v2030 = vadd.f32 %v1902, 1e-06
        %v2031 = vadd.f32 %v1903, 1e-06
        %v2032 = vadd.f32 %v1904, 1e-06
        %v2033 = vadd.f32 %v1905, 1e-06
        %v2034 = vadd.f32 %v1906, 1e-06
        %v2035 = vadd.f32 %v1907, 1e-06
        %v2036 = vadd.f32 %v1908, 1e-06
        %v2037 = vadd.f32 %v1909, 1e-06
        %v2038 = vadd.f32 %v1910, 1e-06
        %v2039 = vadd.f32 %v1911, 1e-06
        %v2040 = vadd.f32 %v1912, 1e-06
        %v2041 = vadd.f32 %v1913, 1e-06
        %v2042 = vadd.f32 %v1914, 1e-06
        %v2043 = vadd.f32 %v1915, 1e-06
        %v2044 = vadd.f32 %v1916, 1e-06
        %v2045 = vadd.f32 %v1917, 1e-06
        %v2046 = vadd.f32 %v1918, 1e-06
        %v2047 = vadd.f32 %v1919, 1e-06
        %v2048 = vadd.f32 %v1920, 1e-06
        %v2049 = vadd.f32 %v1921, 1e-06
        %v2050 = vadd.f32 %v1922, 1e-06
        %v2051 = vadd.f32 %v1923, 1e-06
        %v2052 = vadd.f32 %v1924, 1e-06
        %v2053 = vadd.f32 %v1925, 1e-06
        %v2054 = vadd.f32 %v1926, 1e-06
        %v2055 = vadd.f32 %v1927, 1e-06
        %v2056 = vadd.f32 %v1928, 1e-06
        %v2057 = vadd.f32 %v1929, 1e-06
        %v2058 = vadd.f32 %v1930, 1e-06
        %v2059 = vadd.f32 %v1931, 1e-06
        %v2060 = vadd.f32 %v1932, 1e-06
        %v2061 = vadd.f32 %v1933, 1e-06
        %v2062 = vadd.f32 %v1934, 1e-06
        %v2063 = vadd.f32 %v1935, 1e-06
        %v2064 = vadd.f32 %v1936, 1e-06
        %v2065 = vadd.f32 %v1937, 1e-06
        %v2066 = vadd.f32 %v1938, 1e-06
        %v2067 = vadd.f32 %v1939, 1e-06
        %v2068 = vadd.f32 %v1940, 1e-06
        %v2069 = vadd.f32 %v1941, 1e-06
        %v2070 = vadd.f32 %v1942, 1e-06
        %v2071 = vadd.f32 %v1943, 1e-06
        %v2072 = vadd.f32 %v1944, 1e-06
        %v2073 = vadd.f32 %v1945, 1e-06
        %v2074 = vadd.f32 %v1946, 1e-06
        %v2075 = vadd.f32 %v1947, 1e-06
        %v2076 = vadd.f32 %v1948, 1e-06
        %v2077 = vadd.f32 %v1949, 1e-06
        %v2078 = vadd.f32 %v1950, 1e-06
        %v2079 = vadd.f32 %v1951, 1e-06
        %v2080 = vadd.f32 %v1952, 1e-06
        %v2081 = vadd.f32 %v1953, 1e-06
        %v2082 = vadd.f32 %v1954, 1e-06
        %v2083 = vadd.f32 %v1955, 1e-06
        %v2084 = vadd.f32 %v1956, 1e-06
        %v2085 = vadd.f32 %v1957, 1e-06
        %v2086 = vadd.f32 %v1958, 1e-06
        %v2087 = vadd.f32 %v1959, 1e-06
        %v2088 = vadd.f32 %v1960, 1e-06
        %v2089 = vadd.f32 %v1961, 1e-06
        %v2090 = vadd.f32 %v1962, 1e-06
        %v2091 = vadd.f32 %v1963, 1e-06
        %v2092 = vadd.f32 %v1964, 1e-06
        %v2093 = vadd.f32 %v1965, 1e-06
        %v2094 = vadd.f32 %v1966, 1e-06
        %v2095 = vadd.f32 %v1967, 1e-06
        %v2096 = vadd.f32 %v1968, 1e-06
        %v2097 = vadd.f32 %v1969, 1e-06
        %v2098 = vadd.f32 %v1970, 1e-06
        %v2099 = vadd.f32 %v1971, 1e-06
        %v2100 = vadd.f32 %v1972, 1e-06
        %v2101 = vadd.f32 %v1973, 1e-06
        %v2102 = vadd.f32 %v1974, 1e-06
        %v2103 = vadd.f32 %v1975, 1e-06
        %v2104 = vadd.f32 %v1976, 1e-06
        %v2105 = vadd.f32 %v1977, 1e-06
        %v2106 = vadd.f32 %v1978, 1e-06
        %v2107 = vadd.f32 %v1979, 1e-06
        %v2108 = vadd.f32 %v1980, 1e-06
        %v2109 = vadd.f32 %v1981, 1e-06
        %v2110 = vadd.f32 %v1982, 1e-06
        %v2111 = vadd.f32 %v1983, 1e-06
        %v2112 = vadd.f32 %v1984, 1e-06
        %v2113 = vadd.f32 %v1985, 1e-06
        %v2114 = vadd.f32 %v1986, 1e-06
        %v2115 = vadd.f32 %v1987, 1e-06
        %v2116 = vadd.f32 %v1988, 1e-06
        %v2117 = vadd.f32 %v1989, 1e-06
        %v2118 = vadd.f32 %v1990, 1e-06
        %v2119 = vadd.f32 %v1991, 1e-06
        %v2120 = vadd.f32 %v1992, 1e-06
        %v2121 = vadd.f32 %v1993, 1e-06
        %v2122 = vadd.f32 %v1994, 1e-06
        %v2123 = vadd.f32 %v1995, 1e-06
        %v2124 = vadd.f32 %v1996, 1e-06
        %v2125 = vadd.f32 %v1997, 1e-06
        %v2126 = vadd.f32 %v1998, 1e-06
        %v2127 = vadd.f32 %v1999, 1e-06
        %v2128 = vadd.f32 %v2000, 1e-06
        %v2129 = vadd.f32 %v2001, 1e-06
        %v2130 = vadd.f32 %v2002, 1e-06
        %v2131 = vadd.f32 %v2003, 1e-06
        %v2132 = vadd.f32 %v2004, 1e-06
        %v2133 = vadd.f32 %v2005, 1e-06
        %v2134 = vadd.f32 %v2006, 1e-06
        %v2135 = vadd.f32 %v2007, 1e-06
        %v2136 = vadd.f32 %v2008, 1e-06
        %v2137 = vadd.f32 %v2009, 1e-06
        %v2138 = vadd.f32 %v2010, 1e-06
        %v2139 = vadd.f32 %v2011, 1e-06
        %v2140 = vadd.f32 %v2012, 1e-06
        %v2141 = vadd.f32 %v2013, 1e-06
        %v2142 = vadd.f32 %v2014, 1e-06
        %v2143 = vadd.f32 %v2015, 1e-06
        %v2144 = vadd.f32 %v2016, 1e-06
        %v2145 = vadd.f32 %v2017, 1e-06
        %v2146 = vadd.f32 %v2018, 1e-06
        %v2147 = vadd.f32 %v2019, 1e-06
        %v2148 = vadd.f32 %v2020, 1e-06
        %v2149 = vadd.f32 %v2021, 1e-06
        %v2150 = vadd.f32 %v2022, 1e-06
        %v2151 = vadd.f32 %v2023, 1e-06
        %v2152 = vrsqrt.pop %v2024
        %v2153 = vrsqrt.pop %v2025
        %v2154 = vrsqrt.pop %v2026
        %v2155 = vrsqrt.pop %v2027
        %v2156 = vrsqrt.pop %v2028
        %v2157 = vrsqrt.pop %v2029
        %v2158 = vrsqrt.pop %v2030
        %v2159 = vrsqrt.pop %v2031
        %v2160 = vrsqrt.pop %v2032
        %v2161 = vrsqrt.pop %v2033
        %v2162 = vrsqrt.pop %v2034
        %v2163 = vrsqrt.pop %v2035
        %v2164 = vrsqrt.pop %v2036
        %v2165 = vrsqrt.pop %v2037
        %v2166 = vrsqrt.pop %v2038
        %v2167 = vrsqrt.pop %v2039
        %v2168 = vrsqrt.pop %v2040
        %v2169 = vrsqrt.pop %v2041
        %v2170 = vrsqrt.pop %v2042
        %v2171 = vrsqrt.pop %v2043
        %v2172 = vrsqrt.pop %v2044
        %v2173 = vrsqrt.pop %v2045
        %v2174 = vrsqrt.pop %v2046
        %v2175 = vrsqrt.pop %v2047
        %v2176 = vrsqrt.pop %v2048
        %v2177 = vrsqrt.pop %v2049
        %v2178 = vrsqrt.pop %v2050
        %v2179 = vrsqrt.pop %v2051
        %v2180 = vrsqrt.pop %v2052
        %v2181 = vrsqrt.pop %v2053
        %v2182 = vrsqrt.pop %v2054
        %v2183 = vrsqrt.pop %v2055
        %v2184 = vrsqrt.pop %v2056
        %v2185 = vrsqrt.pop %v2057
        %v2186 = vrsqrt.pop %v2058
        %v2187 = vrsqrt.pop %v2059
        %v2188 = vrsqrt.pop %v2060
        %v2189 = vrsqrt.pop %v2061
        %v2190 = vrsqrt.pop %v2062
        %v2191 = vrsqrt.pop %v2063
        %v2192 = vrsqrt.pop %v2064
        %v2193 = vrsqrt.pop %v2065
        %v2194 = vrsqrt.pop %v2066
        %v2195 = vrsqrt.pop %v2067
        %v2196 = vrsqrt.pop %v2068
        %v2197 = vrsqrt.pop %v2069
        %v2198 = vrsqrt.pop %v2070
        %v2199 = vrsqrt.pop %v2071
        %v2200 = vrsqrt.pop %v2072
        %v2201 = vrsqrt.pop %v2073
        %v2202 = vrsqrt.pop %v2074
        %v2203 = vrsqrt.pop %v2075
        %v2204 = vrsqrt.pop %v2076
        %v2205 = vrsqrt.pop %v2077
        %v2206 = vrsqrt.pop %v2078
        %v2207 = vrsqrt.pop %v2079
        %v2208 = vrsqrt.pop %v2080
        %v2209 = vrsqrt.pop %v2081
        %v2210 = vrsqrt.pop %v2082
        %v2211 = vrsqrt.pop %v2083
        %v2212 = vrsqrt.pop %v2084
        %v2213 = vrsqrt.pop %v2085
        %v2214 = vrsqrt.pop %v2086
        %v2215 = vrsqrt.pop %v2087
        %v2216 = vrsqrt.pop %v2088
        %v2217 = vrsqrt.pop %v2089
        %v2218 = vrsqrt.pop %v2090
        %v2219 = vrsqrt.pop %v2091
        %v2220 = vrsqrt.pop %v2092
        %v2221 = vrsqrt.pop %v2093
        %v2222 = vrsqrt.pop %v2094
        %v2223 = vrsqrt.pop %v2095
        %v2224 = vrsqrt.pop %v2096
        %v2225 = vrsqrt.pop %v2097
        %v2226 = vrsqrt.pop %v2098
        %v2227 = vrsqrt.pop %v2099
        %v2228 = vrsqrt.pop %v2100
        %v2229 = vrsqrt.pop %v2101
        %v2230 = vrsqrt.pop %v2102
        %v2231 = vrsqrt.pop %v2103
        %v2232 = vrsqrt.pop %v2104
        %v2233 = vrsqrt.pop %v2105
        %v2234 = vrsqrt.pop %v2106
        %v2235 = vrsqrt.pop %v2107
        %v2236 = vrsqrt.pop %v2108
        %v2237 = vrsqrt.pop %v2109
        %v2238 = vrsqrt.pop %v2110
        %v2239 = vrsqrt.pop %v2111
        %v2240 = vrsqrt.pop %v2112
        %v2241 = vrsqrt.pop %v2113
        %v2242 = vrsqrt.pop %v2114
        %v2243 = vrsqrt.pop %v2115
        %v2244 = vrsqrt.pop %v2116
        %v2245 = vrsqrt.pop %v2117
        %v2246 = vrsqrt.pop %v2118
        %v2247 = vrsqrt.pop %v2119
        %v2248 = vrsqrt.pop %v2120
        %v2249 = vrsqrt.pop %v2121
        %v2250 = vrsqrt.pop %v2122
        %v2251 = vrsqrt.pop %v2123
        %v2252 = vrsqrt.pop %v2124
        %v2253 = vrsqrt.pop %v2125
        %v2254 = vrsqrt.pop %v2126
        %v2255 = vrsqrt.pop %v2127
        %v2256 = vrsqrt.pop %v2128
        %v2257 = vrsqrt.pop %v2129
        %v2258 = vrsqrt.pop %v2130
        %v2259 = vrsqrt.pop %v2131
        %v2260 = vrsqrt.pop %v2132
        %v2261 = vrsqrt.pop %v2133
        %v2262 = vrsqrt.pop %v2134
        %v2263 = vrsqrt.pop %v2135
        %v2264 = vrsqrt.pop %v2136
        %v2265 = vrsqrt.pop %v2137
        %v2266 = vrsqrt.pop %v2138
        %v2267 = vrsqrt.pop %v2139
        %v2268 = vrsqrt.pop %v2140
        %v2269 = vrsqrt.pop %v2141
        %v2270 = vrsqrt.pop %v2142
        %v2271 = vrsqrt.pop %v2143
        %v2272 = vrsqrt.pop %v2144
        %v2273 = vrsqrt.pop %v2145
        %v2274 = vrsqrt.pop %v2146
        %v2275 = vrsqrt.pop %v2147
        %v2276 = vrsqrt.pop %v2148
        %v2277 = vrsqrt.pop %v2149
        %v2278 = vrsqrt.pop %v2150
        %v2279 = vrsqrt.pop %v2151
        %s2280 = sld [smem:[#allocation2]]
        %v2281 = vld [vmem:[%s202] sm:$0xff]
        %v2282 = vld [vmem:[%s202 + $0x8] sm:$0xff]
        %v2283 = vld [vmem:[%s202 + $0x10] sm:$0xff]
        %v2284 = vld [vmem:[%s202 + $0x18] sm:$0xff]
        %v2285 = vld [vmem:[%s202 + $0x20] sm:$0xff]
        %v2286 = vld [vmem:[%s202 + $0x28] sm:$0xff]
        %v2287 = vld [vmem:[%s202 + $0x30] sm:$0xff]
        %v2288 = vld [vmem:[%s202 + $0x38] sm:$0xff]
        %v2289 = vld [vmem:[%s202 + $0x40] sm:$0xff]
        %v2290 = vld [vmem:[%s202 + $0x48] sm:$0xff]
        %v2291 = vld [vmem:[%s202 + $0x50] sm:$0xff]
        %v2292 = vld [vmem:[%s202 + $0x58] sm:$0xff]
        %v2293 = vld [vmem:[%s202 + $0x60] sm:$0xff]
        %v2294 = vld [vmem:[%s202 + $0x68] sm:$0xff]
        %v2295 = vld [vmem:[%s202 + $0x70] sm:$0xff]
        %v2296 = vld [vmem:[%s202 + $0x78] sm:$0xff]
        %v2297 = vld [vmem:[%s202 + $0x80] sm:$0xff]
        %v2298 = vld [vmem:[%s202 + $0x88] sm:$0xff]
        %v2299 = vld [vmem:[%s202 + $0x90] sm:$0xff]
        %v2300 = vld [vmem:[%s202 + $0x98] sm:$0xff]
        %v2301 = vld [vmem:[%s202 + $0xa0] sm:$0xff]
        %v2302 = vld [vmem:[%s202 + $0xa8] sm:$0xff]
        %v2303 = vld [vmem:[%s202 + $0xb0] sm:$0xff]
        %v2304 = vld [vmem:[%s202 + $0xb8] sm:$0xff]
        %v2305 = vld [vmem:[%s202 + $0xc0] sm:$0xff]
        %v2306 = vld [vmem:[%s202 + $0xc8] sm:$0xff]
        %v2307 = vld [vmem:[%s202 + $0xd0] sm:$0xff]
        %v2308 = vld [vmem:[%s202 + $0xd8] sm:$0xff]
        %v2309 = vld [vmem:[%s202 + $0xe0] sm:$0xff]
        %v2310 = vld [vmem:[%s202 + $0xe8] sm:$0xff]
        %v2311 = vld [vmem:[%s202 + $0xf0] sm:$0xff]
        %v2312 = vld [vmem:[%s202 + $0xf8] sm:$0xff]
        %v2313 = vld [vmem:[%s202 + $0x100] sm:$0xff]
        %v2314 = vld [vmem:[%s202 + $0x108] sm:$0xff]
        %v2315 = vld [vmem:[%s202 + $0x110] sm:$0xff]
        %v2316 = vld [vmem:[%s202 + $0x118] sm:$0xff]
        %v2317 = vld [vmem:[%s202 + $0x120] sm:$0xff]
        %v2318 = vld [vmem:[%s202 + $0x128] sm:$0xff]
        %v2319 = vld [vmem:[%s202 + $0x130] sm:$0xff]
        %v2320 = vld [vmem:[%s202 + $0x138] sm:$0xff]
        %v2321 = vld [vmem:[%s202 + $0x140] sm:$0xff]
        %v2322 = vld [vmem:[%s202 + $0x148] sm:$0xff]
        %v2323 = vld [vmem:[%s202 + $0x150] sm:$0xff]
        %v2324 = vld [vmem:[%s202 + $0x158] sm:$0xff]
        %v2325 = vld [vmem:[%s202 + $0x160] sm:$0xff]
        %v2326 = vld [vmem:[%s202 + $0x168] sm:$0xff]
        %v2327 = vld [vmem:[%s202 + $0x170] sm:$0xff]
        %v2328 = vld [vmem:[%s202 + $0x178] sm:$0xff]
        %v2329 = vld [vmem:[%s202 + $0x180] sm:$0xff]
        %v2330 = vld [vmem:[%s202 + $0x188] sm:$0xff]
        %v2331 = vld [vmem:[%s202 + $0x190] sm:$0xff]
        %v2332 = vld [vmem:[%s202 + $0x198] sm:$0xff]
        %v2333 = vld [vmem:[%s202 + $0x1a0] sm:$0xff]
        %v2334 = vld [vmem:[%s202 + $0x1a8] sm:$0xff]
        %v2335 = vld [vmem:[%s202 + $0x1b0] sm:$0xff]
        %v2336 = vld [vmem:[%s202 + $0x1b8] sm:$0xff]
        %v2337 = vld [vmem:[%s202 + $0x1c0] sm:$0xff]
        %v2338 = vld [vmem:[%s202 + $0x1c8] sm:$0xff]
        %v2339 = vld [vmem:[%s202 + $0x1d0] sm:$0xff]
        %v2340 = vld [vmem:[%s202 + $0x1d8] sm:$0xff]
        %v2341 = vld [vmem:[%s202 + $0x1e0] sm:$0xff]
        %v2342 = vld [vmem:[%s202 + $0x1e8] sm:$0xff]
        %v2343 = vld [vmem:[%s202 + $0x1f0] sm:$0xff]
        %v2344 = vld [vmem:[%s202 + $0x1f8] sm:$0xff]
        %v2345 = vld [vmem:[%s202 + $0x200] sm:$0xff]
        %v2346 = vld [vmem:[%s202 + $0x208] sm:$0xff]
        %v2347 = vld [vmem:[%s202 + $0x210] sm:$0xff]
        %v2348 = vld [vmem:[%s202 + $0x218] sm:$0xff]
        %v2349 = vld [vmem:[%s202 + $0x220] sm:$0xff]
        %v2350 = vld [vmem:[%s202 + $0x228] sm:$0xff]
        %v2351 = vld [vmem:[%s202 + $0x230] sm:$0xff]
        %v2352 = vld [vmem:[%s202 + $0x238] sm:$0xff]
        %v2353 = vld [vmem:[%s202 + $0x240] sm:$0xff]
        %v2354 = vld [vmem:[%s202 + $0x248] sm:$0xff]
        %v2355 = vld [vmem:[%s202 + $0x250] sm:$0xff]
        %v2356 = vld [vmem:[%s202 + $0x258] sm:$0xff]
        %v2357 = vld [vmem:[%s202 + $0x260] sm:$0xff]
        %v2358 = vld [vmem:[%s202 + $0x268] sm:$0xff]
        %v2359 = vld [vmem:[%s202 + $0x270] sm:$0xff]
        %v2360 = vld [vmem:[%s202 + $0x278] sm:$0xff]
        %v2361 = vld [vmem:[%s202 + $0x280] sm:$0xff]
        %v2362 = vld [vmem:[%s202 + $0x288] sm:$0xff]
        %v2363 = vld [vmem:[%s202 + $0x290] sm:$0xff]
        %v2364 = vld [vmem:[%s202 + $0x298] sm:$0xff]
        %v2365 = vld [vmem:[%s202 + $0x2a0] sm:$0xff]
        %v2366 = vld [vmem:[%s202 + $0x2a8] sm:$0xff]
        %v2367 = vld [vmem:[%s202 + $0x2b0] sm:$0xff]
        %v2368 = vld [vmem:[%s202 + $0x2b8] sm:$0xff]
        %v2369 = vld [vmem:[%s202 + $0x2c0] sm:$0xff]
        %v2370 = vld [vmem:[%s202 + $0x2c8] sm:$0xff]
        %v2371 = vld [vmem:[%s202 + $0x2d0] sm:$0xff]
        %v2372 = vld [vmem:[%s202 + $0x2d8] sm:$0xff]
        %v2373 = vld [vmem:[%s202 + $0x2e0] sm:$0xff]
        %v2374 = vld [vmem:[%s202 + $0x2e8] sm:$0xff]
        %v2375 = vld [vmem:[%s202 + $0x2f0] sm:$0xff]
        %v2376 = vld [vmem:[%s202 + $0x2f8] sm:$0xff]
        %v2377 = vld [vmem:[%s202 + $0x300] sm:$0xff]
        %v2378 = vld [vmem:[%s202 + $0x308] sm:$0xff]
        %v2379 = vld [vmem:[%s202 + $0x310] sm:$0xff]
        %v2380 = vld [vmem:[%s202 + $0x318] sm:$0xff]
        %v2381 = vld [vmem:[%s202 + $0x320] sm:$0xff]
        %v2382 = vld [vmem:[%s202 + $0x328] sm:$0xff]
        %v2383 = vld [vmem:[%s202 + $0x330] sm:$0xff]
        %v2384 = vld [vmem:[%s202 + $0x338] sm:$0xff]
        %v2385 = vld [vmem:[%s202 + $0x340] sm:$0xff]
        %v2386 = vld [vmem:[%s202 + $0x348] sm:$0xff]
        %v2387 = vld [vmem:[%s202 + $0x350] sm:$0xff]
        %v2388 = vld [vmem:[%s202 + $0x358] sm:$0xff]
        %v2389 = vld [vmem:[%s202 + $0x360] sm:$0xff]
        %v2390 = vld [vmem:[%s202 + $0x368] sm:$0xff]
        %v2391 = vld [vmem:[%s202 + $0x370] sm:$0xff]
        %v2392 = vld [vmem:[%s202 + $0x378] sm:$0xff]
        %v2393 = vld [vmem:[%s202 + $0x380] sm:$0xff]
        %v2394 = vld [vmem:[%s202 + $0x388] sm:$0xff]
        %v2395 = vld [vmem:[%s202 + $0x390] sm:$0xff]
        %v2396 = vld [vmem:[%s202 + $0x398] sm:$0xff]
        %v2397 = vld [vmem:[%s202 + $0x3a0] sm:$0xff]
        %v2398 = vld [vmem:[%s202 + $0x3a8] sm:$0xff]
        %v2399 = vld [vmem:[%s202 + $0x3b0] sm:$0xff]
        %v2400 = vld [vmem:[%s202 + $0x3b8] sm:$0xff]
        %v2401 = vld [vmem:[%s202 + $0x3c0] sm:$0xff]
        %v2402 = vld [vmem:[%s202 + $0x3c8] sm:$0xff]
        %v2403 = vld [vmem:[%s202 + $0x3d0] sm:$0xff]
        %v2404 = vld [vmem:[%s202 + $0x3d8] sm:$0xff]
        %v2405 = vld [vmem:[%s202 + $0x3e0] sm:$0xff]
        %v2406 = vld [vmem:[%s202 + $0x3e8] sm:$0xff]
        %v2407 = vld [vmem:[%s202 + $0x3f0] sm:$0xff]
        %v2408 = vld [vmem:[%s202 + $0x3f8] sm:$0xff]
        %v2409 = vstv %s2280
        %v2410 = vadd.f32 %v2281, %v2409
        %v2411 = vadd.f32 %v2282, %v2409
        %v2412 = vadd.f32 %v2283, %v2409
        %v2413 = vadd.f32 %v2284, %v2409
        %v2414 = vadd.f32 %v2285, %v2409
        %v2415 = vadd.f32 %v2286, %v2409
        %v2416 = vadd.f32 %v2287, %v2409
        %v2417 = vadd.f32 %v2288, %v2409
        %v2418 = vadd.f32 %v2289, %v2409
        %v2419 = vadd.f32 %v2290, %v2409
        %v2420 = vadd.f32 %v2291, %v2409
        %v2421 = vadd.f32 %v2292, %v2409
        %v2422 = vadd.f32 %v2293, %v2409
        %v2423 = vadd.f32 %v2294, %v2409
        %v2424 = vadd.f32 %v2295, %v2409
        %v2425 = vadd.f32 %v2296, %v2409
        %v2426 = vadd.f32 %v2297, %v2409
        %v2427 = vadd.f32 %v2298, %v2409
        %v2428 = vadd.f32 %v2299, %v2409
        %v2429 = vadd.f32 %v2300, %v2409
        %v2430 = vadd.f32 %v2301, %v2409
        %v2431 = vadd.f32 %v2302, %v2409
        %v2432 = vadd.f32 %v2303, %v2409
        %v2433 = vadd.f32 %v2304, %v2409
        %v2434 = vadd.f32 %v2305, %v2409
        %v2435 = vadd.f32 %v2306, %v2409
        %v2436 = vadd.f32 %v2307, %v2409
        %v2437 = vadd.f32 %v2308, %v2409
        %v2438 = vadd.f32 %v2309, %v2409
        %v2439 = vadd.f32 %v2310, %v2409
        %v2440 = vadd.f32 %v2311, %v2409
        %v2441 = vadd.f32 %v2312, %v2409
        %v2442 = vadd.f32 %v2313, %v2409
        %v2443 = vadd.f32 %v2314, %v2409
        %v2444 = vadd.f32 %v2315, %v2409
        %v2445 = vadd.f32 %v2316, %v2409
        %v2446 = vadd.f32 %v2317, %v2409
        %v2447 = vadd.f32 %v2318, %v2409
        %v2448 = vadd.f32 %v2319, %v2409
        %v2449 = vadd.f32 %v2320, %v2409
        %v2450 = vadd.f32 %v2321, %v2409
        %v2451 = vadd.f32 %v2322, %v2409
        %v2452 = vadd.f32 %v2323, %v2409
        %v2453 = vadd.f32 %v2324, %v2409
        %v2454 = vadd.f32 %v2325, %v2409
        %v2455 = vadd.f32 %v2326, %v2409
        %v2456 = vadd.f32 %v2327, %v2409
        %v2457 = vadd.f32 %v2328, %v2409
        %v2458 = vadd.f32 %v2329, %v2409
        %v2459 = vadd.f32 %v2330, %v2409
        %v2460 = vadd.f32 %v2331, %v2409
        %v2461 = vadd.f32 %v2332, %v2409
        %v2462 = vadd.f32 %v2333, %v2409
        %v2463 = vadd.f32 %v2334, %v2409
        %v2464 = vadd.f32 %v2335, %v2409
        %v2465 = vadd.f32 %v2336, %v2409
        %v2466 = vadd.f32 %v2337, %v2409
        %v2467 = vadd.f32 %v2338, %v2409
        %v2468 = vadd.f32 %v2339, %v2409
        %v2469 = vadd.f32 %v2340, %v2409
        %v2470 = vadd.f32 %v2341, %v2409
        %v2471 = vadd.f32 %v2342, %v2409
        %v2472 = vadd.f32 %v2343, %v2409
        %v2473 = vadd.f32 %v2344, %v2409
        %v2474 = vadd.f32 %v2345, %v2409
        %v2475 = vadd.f32 %v2346, %v2409
        %v2476 = vadd.f32 %v2347, %v2409
        %v2477 = vadd.f32 %v2348, %v2409
        %v2478 = vadd.f32 %v2349, %v2409
        %v2479 = vadd.f32 %v2350, %v2409
        %v2480 = vadd.f32 %v2351, %v2409
        %v2481 = vadd.f32 %v2352, %v2409
        %v2482 = vadd.f32 %v2353, %v2409
        %v2483 = vadd.f32 %v2354, %v2409
        %v2484 = vadd.f32 %v2355, %v2409
        %v2485 = vadd.f32 %v2356, %v2409
        %v2486 = vadd.f32 %v2357, %v2409
        %v2487 = vadd.f32 %v2358, %v2409
        %v2488 = vadd.f32 %v2359, %v2409
        %v2489 = vadd.f32 %v2360, %v2409
        %v2490 = vadd.f32 %v2361, %v2409
        %v2491 = vadd.f32 %v2362, %v2409
        %v2492 = vadd.f32 %v2363, %v2409
        %v2493 = vadd.f32 %v2364, %v2409
        %v2494 = vadd.f32 %v2365, %v2409
        %v2495 = vadd.f32 %v2366, %v2409
        %v2496 = vadd.f32 %v2367, %v2409
        %v2497 = vadd.f32 %v2368, %v2409
        %v2498 = vadd.f32 %v2369, %v2409
        %v2499 = vadd.f32 %v2370, %v2409
        %v2500 = vadd.f32 %v2371, %v2409
        %v2501 = vadd.f32 %v2372, %v2409
        %v2502 = vadd.f32 %v2373, %v2409
        %v2503 = vadd.f32 %v2374, %v2409
        %v2504 = vadd.f32 %v2375, %v2409
        %v2505 = vadd.f32 %v2376, %v2409
        %v2506 = vadd.f32 %v2377, %v2409
        %v2507 = vadd.f32 %v2378, %v2409
        %v2508 = vadd.f32 %v2379, %v2409
        %v2509 = vadd.f32 %v2380, %v2409
        %v2510 = vadd.f32 %v2381, %v2409
        %v2511 = vadd.f32 %v2382, %v2409
        %v2512 = vadd.f32 %v2383, %v2409
        %v2513 = vadd.f32 %v2384, %v2409
        %v2514 = vadd.f32 %v2385, %v2409
        %v2515 = vadd.f32 %v2386, %v2409
        %v2516 = vadd.f32 %v2387, %v2409
        %v2517 = vadd.f32 %v2388, %v2409
        %v2518 = vadd.f32 %v2389, %v2409
        %v2519 = vadd.f32 %v2390, %v2409
        %v2520 = vadd.f32 %v2391, %v2409
        %v2521 = vadd.f32 %v2392, %v2409
        %v2522 = vadd.f32 %v2393, %v2409
        %v2523 = vadd.f32 %v2394, %v2409
        %v2524 = vadd.f32 %v2395, %v2409
        %v2525 = vadd.f32 %v2396, %v2409
        %v2526 = vadd.f32 %v2397, %v2409
        %v2527 = vadd.f32 %v2398, %v2409
        %v2528 = vadd.f32 %v2399, %v2409
        %v2529 = vadd.f32 %v2400, %v2409
        %v2530 = vadd.f32 %v2401, %v2409
        %v2531 = vadd.f32 %v2402, %v2409
        %v2532 = vadd.f32 %v2403, %v2409
        %v2533 = vadd.f32 %v2404, %v2409
        %v2534 = vadd.f32 %v2405, %v2409
        %v2535 = vadd.f32 %v2406, %v2409
        %v2536 = vadd.f32 %v2407, %v2409
        %v2537 = vadd.f32 %v2408, %v2409
        %v2538 = vmul.f32 %v2410, %v2152
        %v2539 = vmul.f32 %v2411, %v2153
        %v2540 = vmul.f32 %v2412, %v2154
        %v2541 = vmul.f32 %v2413, %v2155
        %v2542 = vmul.f32 %v2414, %v2156
        %v2543 = vmul.f32 %v2415, %v2157
        %v2544 = vmul.f32 %v2416, %v2158
        %v2545 = vmul.f32 %v2417, %v2159
        %v2546 = vmul.f32 %v2418, %v2160
        %v2547 = vmul.f32 %v2419, %v2161
        %v2548 = vmul.f32 %v2420, %v2162
        %v2549 = vmul.f32 %v2421, %v2163
        %v2550 = vmul.f32 %v2422, %v2164
        %v2551 = vmul.f32 %v2423, %v2165
        %v2552 = vmul.f32 %v2424, %v2166
        %v2553 = vmul.f32 %v2425, %v2167
        %v2554 = vmul.f32 %v2426, %v2168
        %v2555 = vmul.f32 %v2427, %v2169
        %v2556 = vmul.f32 %v2428, %v2170
        %v2557 = vmul.f32 %v2429, %v2171
        %v2558 = vmul.f32 %v2430, %v2172
        %v2559 = vmul.f32 %v2431, %v2173
        %v2560 = vmul.f32 %v2432, %v2174
        %v2561 = vmul.f32 %v2433, %v2175
        %v2562 = vmul.f32 %v2434, %v2176
        %v2563 = vmul.f32 %v2435, %v2177
        %v2564 = vmul.f32 %v2436, %v2178
        %v2565 = vmul.f32 %v2437, %v2179
        %v2566 = vmul.f32 %v2438, %v2180
        %v2567 = vmul.f32 %v2439, %v2181
        %v2568 = vmul.f32 %v2440, %v2182
        %v2569 = vmul.f32 %v2441, %v2183
        %v2570 = vmul.f32 %v2442, %v2184
        %v2571 = vmul.f32 %v2443, %v2185
        %v2572 = vmul.f32 %v2444, %v2186
        %v2573 = vmul.f32 %v2445, %v2187
        %v2574 = vmul.f32 %v2446, %v2188
        %v2575 = vmul.f32 %v2447, %v2189
        %v2576 = vmul.f32 %v2448, %v2190
        %v2577 = vmul.f32 %v2449, %v2191
        %v2578 = vmul.f32 %v2450, %v2192
        %v2579 = vmul.f32 %v2451, %v2193
        %v2580 = vmul.f32 %v2452, %v2194
        %v2581 = vmul.f32 %v2453, %v2195
        %v2582 = vmul.f32 %v2454, %v2196
        %v2583 = vmul.f32 %v2455, %v2197
        %v2584 = vmul.f32 %v2456, %v2198
        %v2585 = vmul.f32 %v2457, %v2199
        %v2586 = vmul.f32 %v2458, %v2200
        %v2587 = vmul.f32 %v2459, %v2201
        %v2588 = vmul.f32 %v2460, %v2202
        %v2589 = vmul.f32 %v2461, %v2203
        %v2590 = vmul.f32 %v2462, %v2204
        %v2591 = vmul.f32 %v2463, %v2205
        %v2592 = vmul.f32 %v2464, %v2206
        %v2593 = vmul.f32 %v2465, %v2207
        %v2594 = vmul.f32 %v2466, %v2208
        %v2595 = vmul.f32 %v2467, %v2209
        %v2596 = vmul.f32 %v2468, %v2210
        %v2597 = vmul.f32 %v2469, %v2211
        %v2598 = vmul.f32 %v2470, %v2212
        %v2599 = vmul.f32 %v2471, %v2213
        %v2600 = vmul.f32 %v2472, %v2214
        %v2601 = vmul.f32 %v2473, %v2215
        %v2602 = vmul.f32 %v2474, %v2216
        %v2603 = vmul.f32 %v2475, %v2217
        %v2604 = vmul.f32 %v2476, %v2218
        %v2605 = vmul.f32 %v2477, %v2219
        %v2606 = vmul.f32 %v2478, %v2220
        %v2607 = vmul.f32 %v2479, %v2221
        %v2608 = vmul.f32 %v2480, %v2222
        %v2609 = vmul.f32 %v2481, %v2223
        %v2610 = vmul.f32 %v2482, %v2224
        %v2611 = vmul.f32 %v2483, %v2225
        %v2612 = vmul.f32 %v2484, %v2226
        %v2613 = vmul.f32 %v2485, %v2227
        %v2614 = vmul.f32 %v2486, %v2228
        %v2615 = vmul.f32 %v2487, %v2229
        %v2616 = vmul.f32 %v2488, %v2230
        %v2617 = vmul.f32 %v2489, %v2231
        %v2618 = vmul.f32 %v2490, %v2232
        %v2619 = vmul.f32 %v2491, %v2233
        %v2620 = vmul.f32 %v2492, %v2234
        %v2621 = vmul.f32 %v2493, %v2235
        %v2622 = vmul.f32 %v2494, %v2236
        %v2623 = vmul.f32 %v2495, %v2237
        %v2624 = vmul.f32 %v2496, %v2238
        %v2625 = vmul.f32 %v2497, %v2239
        %v2626 = vmul.f32 %v2498, %v2240
        %v2627 = vmul.f32 %v2499, %v2241
        %v2628 = vmul.f32 %v2500, %v2242
        %v2629 = vmul.f32 %v2501, %v2243
        %v2630 = vmul.f32 %v2502, %v2244
        %v2631 = vmul.f32 %v2503, %v2245
        %v2632 = vmul.f32 %v2504, %v2246
        %v2633 = vmul.f32 %v2505, %v2247
        %v2634 = vmul.f32 %v2506, %v2248
        %v2635 = vmul.f32 %v2507, %v2249
        %v2636 = vmul.f32 %v2508, %v2250
        %v2637 = vmul.f32 %v2509, %v2251
        %v2638 = vmul.f32 %v2510, %v2252
        %v2639 = vmul.f32 %v2511, %v2253
        %v2640 = vmul.f32 %v2512, %v2254
        %v2641 = vmul.f32 %v2513, %v2255
        %v2642 = vmul.f32 %v2514, %v2256
        %v2643 = vmul.f32 %v2515, %v2257
        %v2644 = vmul.f32 %v2516, %v2258
        %v2645 = vmul.f32 %v2517, %v2259
        %v2646 = vmul.f32 %v2518, %v2260
        %v2647 = vmul.f32 %v2519, %v2261
        %v2648 = vmul.f32 %v2520, %v2262
        %v2649 = vmul.f32 %v2521, %v2263
        %v2650 = vmul.f32 %v2522, %v2264
        %v2651 = vmul.f32 %v2523, %v2265
        %v2652 = vmul.f32 %v2524, %v2266
        %v2653 = vmul.f32 %v2525, %v2267
        %v2654 = vmul.f32 %v2526, %v2268
        %v2655 = vmul.f32 %v2527, %v2269
        %v2656 = vmul.f32 %v2528, %v2270
        %v2657 = vmul.f32 %v2529, %v2271
        %v2658 = vmul.f32 %v2530, %v2272
        %v2659 = vmul.f32 %v2531, %v2273
        %v2660 = vmul.f32 %v2532, %v2274
        %v2661 = vmul.f32 %v2533, %v2275
        %v2662 = vmul.f32 %v2534, %v2276
        %v2663 = vmul.f32 %v2535, %v2277
        %v2664 = vmul.f32 %v2536, %v2278
        %v2665 = vmul.f32 %v2537, %v2279
        %2666 = vst [vmem:[%s229] sm:$0xff] %v2538
        %2667 = vst [vmem:[%s229 + $0x8] sm:$0xff] %v2539
        %2668 = vst [vmem:[%s229 + $0x10] sm:$0xff] %v2540
        %2669 = vst [vmem:[%s229 + $0x18] sm:$0xff] %v2541
        %2670 = vst [vmem:[%s229 + $0x20] sm:$0xff] %v2542
        %2671 = vst [vmem:[%s229 + $0x28] sm:$0xff] %v2543
        %2672 = vst [vmem:[%s229 + $0x30] sm:$0xff] %v2544
        %2673 = vst [vmem:[%s229 + $0x38] sm:$0xff] %v2545
        %2674 = vst [vmem:[%s229 + $0x40] sm:$0xff] %v2546
        %2675 = vst [vmem:[%s229 + $0x48] sm:$0xff] %v2547
        %2676 = vst [vmem:[%s229 + $0x50] sm:$0xff] %v2548
        %2677 = vst [vmem:[%s229 + $0x58] sm:$0xff] %v2549
        %2678 = vst [vmem:[%s229 + $0x60] sm:$0xff] %v2550
        %2679 = vst [vmem:[%s229 + $0x68] sm:$0xff] %v2551
        %2680 = vst [vmem:[%s229 + $0x70] sm:$0xff] %v2552
        %2681 = vst [vmem:[%s229 + $0x78] sm:$0xff] %v2553
        %2682 = vst [vmem:[%s229 + $0x80] sm:$0xff] %v2554
        %2683 = vst [vmem:[%s229 + $0x88] sm:$0xff] %v2555
        %2684 = vst [vmem:[%s229 + $0x90] sm:$0xff] %v2556
        %2685 = vst [vmem:[%s229 + $0x98] sm:$0xff] %v2557
        %2686 = vst [vmem:[%s229 + $0xa0] sm:$0xff] %v2558
        %2687 = vst [vmem:[%s229 + $0xa8] sm:$0xff] %v2559
        %2688 = vst [vmem:[%s229 + $0xb0] sm:$0xff] %v2560
        %2689 = vst [vmem:[%s229 + $0xb8] sm:$0xff] %v2561
        %2690 = vst [vmem:[%s229 + $0xc0] sm:$0xff] %v2562
        %2691 = vst [vmem:[%s229 + $0xc8] sm:$0xff] %v2563
        %2692 = vst [vmem:[%s229 + $0xd0] sm:$0xff] %v2564
        %2693 = vst [vmem:[%s229 + $0xd8] sm:$0xff] %v2565
        %2694 = vst [vmem:[%s229 + $0xe0] sm:$0xff] %v2566
        %2695 = vst [vmem:[%s229 + $0xe8] sm:$0xff] %v2567
        %2696 = vst [vmem:[%s229 + $0xf0] sm:$0xff] %v2568
        %2697 = vst [vmem:[%s229 + $0xf8] sm:$0xff] %v2569
        %2698 = vst [vmem:[%s229 + $0x100] sm:$0xff] %v2570
        %2699 = vst [vmem:[%s229 + $0x108] sm:$0xff] %v2571
        %2700 = vst [vmem:[%s229 + $0x110] sm:$0xff] %v2572
        %2701 = vst [vmem:[%s229 + $0x118] sm:$0xff] %v2573
        %2702 = vst [vmem:[%s229 + $0x120] sm:$0xff] %v2574
        %2703 = vst [vmem:[%s229 + $0x128] sm:$0xff] %v2575
        %2704 = vst [vmem:[%s229 + $0x130] sm:$0xff] %v2576
        %2705 = vst [vmem:[%s229 + $0x138] sm:$0xff] %v2577
        %2706 = vst [vmem:[%s229 + $0x140] sm:$0xff] %v2578
        %2707 = vst [vmem:[%s229 + $0x148] sm:$0xff] %v2579
        %2708 = vst [vmem:[%s229 + $0x150] sm:$0xff] %v2580
        %2709 = vst [vmem:[%s229 + $0x158] sm:$0xff] %v2581
        %2710 = vst [vmem:[%s229 + $0x160] sm:$0xff] %v2582
        %2711 = vst [vmem:[%s229 + $0x168] sm:$0xff] %v2583
        %2712 = vst [vmem:[%s229 + $0x170] sm:$0xff] %v2584
        %2713 = vst [vmem:[%s229 + $0x178] sm:$0xff] %v2585
        %2714 = vst [vmem:[%s229 + $0x180] sm:$0xff] %v2586
        %2715 = vst [vmem:[%s229 + $0x188] sm:$0xff] %v2587
        %2716 = vst [vmem:[%s229 + $0x190] sm:$0xff] %v2588
        %2717 = vst [vmem:[%s229 + $0x198] sm:$0xff] %v2589
        %2718 = vst [vmem:[%s229 + $0x1a0] sm:$0xff] %v2590
        %2719 = vst [vmem:[%s229 + $0x1a8] sm:$0xff] %v2591
        %2720 = vst [vmem:[%s229 + $0x1b0] sm:$0xff] %v2592
        %2721 = vst [vmem:[%s229 + $0x1b8] sm:$0xff] %v2593
        %2722 = vst [vmem:[%s229 + $0x1c0] sm:$0xff] %v2594
        %2723 = vst [vmem:[%s229 + $0x1c8] sm:$0xff] %v2595
        %2724 = vst [vmem:[%s229 + $0x1d0] sm:$0xff] %v2596
        %2725 = vst [vmem:[%s229 + $0x1d8] sm:$0xff] %v2597
        %2726 = vst [vmem:[%s229 + $0x1e0] sm:$0xff] %v2598
        %2727 = vst [vmem:[%s229 + $0x1e8] sm:$0xff] %v2599
        %2728 = vst [vmem:[%s229 + $0x1f0] sm:$0xff] %v2600
        %2729 = vst [vmem:[%s229 + $0x1f8] sm:$0xff] %v2601
        %2730 = vst [vmem:[%s229 + $0x200] sm:$0xff] %v2602
        %2731 = vst [vmem:[%s229 + $0x208] sm:$0xff] %v2603
        %2732 = vst [vmem:[%s229 + $0x210] sm:$0xff] %v2604
        %2733 = vst [vmem:[%s229 + $0x218] sm:$0xff] %v2605
        %2734 = vst [vmem:[%s229 + $0x220] sm:$0xff] %v2606
        %2735 = vst [vmem:[%s229 + $0x228] sm:$0xff] %v2607
        %2736 = vst [vmem:[%s229 + $0x230] sm:$0xff] %v2608
        %2737 = vst [vmem:[%s229 + $0x238] sm:$0xff] %v2609
        %2738 = vst [vmem:[%s229 + $0x240] sm:$0xff] %v2610
        %2739 = vst [vmem:[%s229 + $0x248] sm:$0xff] %v2611
        %2740 = vst [vmem:[%s229 + $0x250] sm:$0xff] %v2612
        %2741 = vst [vmem:[%s229 + $0x258] sm:$0xff] %v2613
        %2742 = vst [vmem:[%s229 + $0x260] sm:$0xff] %v2614
        %2743 = vst [vmem:[%s229 + $0x268] sm:$0xff] %v2615
        %2744 = vst [vmem:[%s229 + $0x270] sm:$0xff] %v2616
        %2745 = vst [vmem:[%s229 + $0x278] sm:$0xff] %v2617
        %2746 = vst [vmem:[%s229 + $0x280] sm:$0xff] %v2618
        %2747 = vst [vmem:[%s229 + $0x288] sm:$0xff] %v2619
        %2748 = vst [vmem:[%s229 + $0x290] sm:$0xff] %v2620
        %2749 = vst [vmem:[%s229 + $0x298] sm:$0xff] %v2621
        %2750 = vst [vmem:[%s229 + $0x2a0] sm:$0xff] %v2622
        %2751 = vst [vmem:[%s229 + $0x2a8] sm:$0xff] %v2623
        %2752 = vst [vmem:[%s229 + $0x2b0] sm:$0xff] %v2624
        %2753 = vst [vmem:[%s229 + $0x2b8] sm:$0xff] %v2625
        %2754 = vst [vmem:[%s229 + $0x2c0] sm:$0xff] %v2626
        %2755 = vst [vmem:[%s229 + $0x2c8] sm:$0xff] %v2627
        %2756 = vst [vmem:[%s229 + $0x2d0] sm:$0xff] %v2628
        %2757 = vst [vmem:[%s229 + $0x2d8] sm:$0xff] %v2629
        %2758 = vst [vmem:[%s229 + $0x2e0] sm:$0xff] %v2630
        %2759 = vst [vmem:[%s229 + $0x2e8] sm:$0xff] %v2631
        %2760 = vst [vmem:[%s229 + $0x2f0] sm:$0xff] %v2632
        %2761 = vst [vmem:[%s229 + $0x2f8] sm:$0xff] %v2633
        %2762 = vst [vmem:[%s229 + $0x300] sm:$0xff] %v2634
        %2763 = vst [vmem:[%s229 + $0x308] sm:$0xff] %v2635
        %2764 = vst [vmem:[%s229 + $0x310] sm:$0xff] %v2636
        %2765 = vst [vmem:[%s229 + $0x318] sm:$0xff] %v2637
        %2766 = vst [vmem:[%s229 + $0x320] sm:$0xff] %v2638
        %2767 = vst [vmem:[%s229 + $0x328] sm:$0xff] %v2639
        %2768 = vst [vmem:[%s229 + $0x330] sm:$0xff] %v2640
        %2769 = vst [vmem:[%s229 + $0x338] sm:$0xff] %v2641
        %2770 = vst [vmem:[%s229 + $0x340] sm:$0xff] %v2642
        %2771 = vst [vmem:[%s229 + $0x348] sm:$0xff] %v2643
        %2772 = vst [vmem:[%s229 + $0x350] sm:$0xff] %v2644
        %2773 = vst [vmem:[%s229 + $0x358] sm:$0xff] %v2645
        %2774 = vst [vmem:[%s229 + $0x360] sm:$0xff] %v2646
        %2775 = vst [vmem:[%s229 + $0x368] sm:$0xff] %v2647
        %2776 = vst [vmem:[%s229 + $0x370] sm:$0xff] %v2648
        %2777 = vst [vmem:[%s229 + $0x378] sm:$0xff] %v2649
        %2778 = vst [vmem:[%s229 + $0x380] sm:$0xff] %v2650
        %2779 = vst [vmem:[%s229 + $0x388] sm:$0xff] %v2651
        %2780 = vst [vmem:[%s229 + $0x390] sm:$0xff] %v2652
        %2781 = vst [vmem:[%s229 + $0x398] sm:$0xff] %v2653
        %2782 = vst [vmem:[%s229 + $0x3a0] sm:$0xff] %v2654
        %2783 = vst [vmem:[%s229 + $0x3a8] sm:$0xff] %v2655
        %2784 = vst [vmem:[%s229 + $0x3b0] sm:$0xff] %v2656
        %2785 = vst [vmem:[%s229 + $0x3b8] sm:$0xff] %v2657
        %2786 = vst [vmem:[%s229 + $0x3c0] sm:$0xff] %v2658
        %2787 = vst [vmem:[%s229 + $0x3c8] sm:$0xff] %v2659
        %2788 = vst [vmem:[%s229 + $0x3d0] sm:$0xff] %v2660
        %2789 = vst [vmem:[%s229 + $0x3d8] sm:$0xff] %v2661
        %2790 = vst [vmem:[%s229 + $0x3e0] sm:$0xff] %v2662
        %2791 = vst [vmem:[%s229 + $0x3e8] sm:$0xff] %v2663
        %2792 = vst [vmem:[%s229 + $0x3f0] sm:$0xff] %v2664
        %2793 = vst [vmem:[%s229 + $0x3f8] sm:$0xff] %v2665
        %s2794 = sand.u32 %s105, 1
        %s2795 = scalar_lea.sflag [#allocation5], %s2794
        %s2796 = sand.u32 %s105, 1
        %s2797 = smul.addr %s2796, 1024
        %s2798 = scalar_lea.vmem [#allocation8], %s2797
        // Predicated region
        $region41: #{tpu_custom_call.1} parent=31 // pred_check
          %p2799 = pneg %p115
        $region42: #{tpu_custom_call.1} parent=31 // pred_check_branch
          %2801 = sbr.rel (%p2799) target = $region44
        $region43: #{tpu_custom_call.1} parent=31 // pred_region
          %s2803 = ssub.s32 16384, 16384
          %2804 = vsyncadd %s2795, %s2803
          %s2805 = smul.addr %s24, 128
          %s2806 = smul.addr %s2805, 128
          %s2807 = scalar_lea.hbm %s3, %s2806
          %s2808 = sshll.u32 %s2798, 4
          %s2809 = int_to_ptr.vmem [resolvable:$true] %s2808
          %2814 = dma.vmem_to_hbm [thread:$0]  %s2809, 16384, %s2807, %s2795, 256, 256, 16
        $region44: #{tpu_custom_call.1} parent=31 // pred_fallthru
          _
      $region32: #{tpu_custom_call.1} parent=5 // pred_fallthru
        _
      %p2815 = scmp.le.s32.totalorder 2, %s19
      // Predicated region
      $region45: #{tpu_custom_call.1} parent=5 // pred_check
        %p2816 = pneg %p2815
      $region46: #{tpu_custom_call.1} parent=5 // pred_check_branch
        %2818 = sbr.rel (%p2816) target = $region48
      $region47: #{tpu_custom_call.1} parent=5 // pred_region
        %s2819 = ssub.s32 %s19, 2
        // Predicated region
        $region49: #{tpu_custom_call.1} parent=47 // pred_check
          %p2820 = pneg %p121
        $region50: #{tpu_custom_call.1} parent=47 // pred_check_branch
          %2822 = sbr.rel (%p2820) target = $region52
        $region51: #{tpu_custom_call.1} parent=47 // pred_region
          %s2823 = sand.u32 %s106, 1
          %s2824 = scalar_lea.sflag [#allocation5], %s2823
          %s2825 = sand.u32 %s106, 1
          %s2826 = smul.addr %s2825, 1024
          %s2827 = scalar_lea.vmem [#allocation8], %s2826
          %2828 = dma.done %s2824, 16384
        $region52: #{tpu_custom_call.1} parent=47 // pred_fallthru
          _
      $region48: #{tpu_custom_call.1} parent=5 // pred_fallthru
        _
    $region6: #{tpu_custom_call.1} parent=1 // loop_footer
      %s23 = sadd.s32 1, %s19
    $region7: #{tpu_custom_call.1} parent=1 // loop_footer_branch
      %18 = sbr.rel target = $region3
    $region8: #{tpu_custom_call.1} parent=1 // loop_exit
      _
    %2829 = vsyncpa [#allocation4], 1
    %s2830 = scalar_lea.sflag [#allocation4], 1
    %2831 = vsyncpa %s2830, 1
    %2832 = vsyncpa [#allocation7], 1
    %s2833 = scalar_lea.sflag [#allocation7], 1
    %2834 = vsyncpa %s2833, 1
    %2835 = vsyncpa [#allocation5], 1
    %s2836 = scalar_lea.sflag [#allocation5], 1
    %2837 = vsyncpa %s2836, 1

</llo_original>
